<compile_context>
chip_gen: v5e
topology: v5e:2x2
jax: 0.10.0
libtpu: 0.0.40
codegen_flags: <defaults>
</compile_context>

<pallas_src>
import functools

import jax
import jax.numpy as jnp
from jax.experimental import pallas as pl
from jax.experimental.pallas import tpu as pltpu

EPS = 1e-5
LANE = 128


def _mlp_kernel(x_ref, w1_ref, w2_ref, wo_ref, vecs_ref, out_ref, hid_ref):
    H1 = w1_ref.shape[1]
    H2 = w2_ref.shape[1]
    O = wo_ref.shape[1]

    vecs = vecs_ref[...]                                   # (3, H1+H2+O_pad) f32, tiny

    def bias_relu_bn(h, off, width):
        # h: f32 pre-activation. Rows of vecs: [bias, gamma, beta].
        b = vecs[0:1, off:off + width]
        g = vecs[1:2, off:off + width]
        be = vecs[2:3, off:off + width]
        h = jnp.maximum(h + b, 0.0)
        mean = jnp.mean(h, axis=0, keepdims=True)
        c = h - mean
        var = jnp.mean(c * c, axis=0, keepdims=True)       # centered (two-pass) variance
        return c * (g * jax.lax.rsqrt(var + EPS)) + be

    # ---- layer 1: Linear (bf16 MXU, f32 acc) -> ReLU -> BatchNorm1d (batch stats) ----
    h = jnp.dot(x_ref[...], w1_ref[...], preferred_element_type=jnp.float32)
    h = bias_relu_bn(h, 0, H1)

    # ---- layer 2: Linear -> ReLU -> BatchNorm1d ----
    h = jnp.dot(h.astype(jnp.bfloat16), w2_ref[...], preferred_element_type=jnp.float32)
    h = bias_relu_bn(h, H1, H2)

    # final hidden activations (second return value of the PyTorch forward)
    hid_ref[...] = h.astype(hid_ref.dtype)

    # ---- output layer: Linear on the true (H2, O) wo; lane-dense padded store ----
    res = jnp.dot(h.astype(jnp.bfloat16), wo_ref[...], preferred_element_type=jnp.float32)
    res = res + vecs[0:1, H1 + H2:H1 + H2 + O]             # output bias
    out_ref[...] = jnp.zeros_like(out_ref)                 # dense fill of padded block
    out_ref[:, :O] = res.astype(out_ref.dtype)             # tiny masked sub-store


@functools.partial(jax.jit, static_argnames=("out_dim",))
def mlp_forward(x, packed, *, out_dim):
    """x: (B, C, H, W) or (B, D_in). packed: output of pack_params. Returns (output, final_hidden)."""
    (w1, w2, wo, vecs) = packed
    B = x.shape[0]
    x2d = x.reshape(B, -1).astype(jnp.bfloat16)             # same flatten as torch .view(B, -1)
    D_in = x2d.shape[1]
    H1, H2, O = w1.shape[1], w2.shape[1], wo.shape[1]
    O_pad = vecs.shape[1] - H1 - H2

    flops = 2 * B * (D_in * H1 + H1 * H2 + H2 * O)
    bytes_accessed = (x2d.size * 2 + w1.size * 2 + w2.size * 2 + wo.size * 2
                      + vecs.size * 4 + B * O_pad * 4 + B * H2 * 4)

    vmem = pl.BlockSpec(memory_space=pltpu.MemorySpace.VMEM)
    out_pad, hidden = pl.pallas_call(
        _mlp_kernel,
        out_shape=(
            jax.ShapeDtypeStruct((B, O_pad), jnp.float32),   # lane-dense padded output
            jax.ShapeDtypeStruct((B, H2), jnp.float32),
        ),
        in_specs=[vmem] * 5,
        out_specs=(vmem, vmem),
        compiler_params=pltpu.CompilerParams(
            # actual footprint ~1.4 MiB; single grid point, everything prefetched in the
            # prologue — no tiling/pipelining on purpose (per-step overhead > DMA time).
            vmem_limit_bytes=4 * 1024 * 1024,
        ),
        cost_estimate=pl.CostEstimate(
            flops=flops, transcendentals=0, bytes_accessed=bytes_accessed),
    )(x2d, w1, w2, wo, vecs)
    return out_pad[:, :out_dim], hidden


def init_params(key, input_size, output_size, hidden_sizes=(512, 256)):
    """f32 'master' params mimicking PyTorch defaults (uniform +/- 1/sqrt(fan_in)).

    Layout: [(w1, b1, g1, be1), (w2, b2, g2, be2), (wo, bo)] flattened, with
    w stored as (in, out) (transposed vs PyTorch) and 1-D bias/gamma/beta.
    """
    params = []
    prev = input_size
    keys = jax.random.split(key, 2 * len(hidden_sizes) + 2)
    ki = 0
    for size in hidden_sizes:
        bound = 1.0 / (prev ** 0.5)
        w = jax.random.uniform(keys[ki], (prev, size), jnp.float32, -bound, bound); ki += 1
        b = jax.random.uniform(keys[ki], (size,), jnp.float32, -bound, bound); ki += 1
        gamma = jnp.ones((size,), jnp.float32)
        beta = jnp.zeros((size,), jnp.float32)
        params += [w, b, gamma, beta]
        prev = size
    bound = 1.0 / (prev ** 0.5)
    wo = jax.random.uniform(keys[ki], (prev, output_size), jnp.float32, -bound, bound); ki += 1
    bo = jax.random.uniform(keys[ki], (1, output_size), jnp.float32, -bound, bound); ki += 1
    params += [wo, bo]
    return tuple(params)


def pack_params(params):
    """Kernel-ready layout: bf16 weights (unpadded), one packed f32 (3, H1+H2+128) vector slab."""
    (w1, b1, g1, be1, w2, b2, g2, be2, wo, bo) = params
    H1, H2, O = w1.shape[1], w2.shape[1], wo.shape[1]
    O_pad = max(LANE, ((O + LANE - 1) // LANE) * LANE)
    vecs = jnp.zeros((3, H1 + H2 + O_pad), jnp.float32)
    vecs = vecs.at[0, :H1].set(b1).at[1, :H1].set(g1).at[2, :H1].set(be1)
    vecs = vecs.at[0, H1:H1 + H2].set(b2).at[1, H1:H1 + H2].set(g2).at[2, H1:H1 + H2].set(be2)
    vecs = vecs.at[0, H1 + H2:H1 + H2 + O].set(bo.reshape(O))
    return (w1.astype(jnp.bfloat16), w2.astype(jnp.bfloat16), wo.astype(jnp.bfloat16), vecs)


def _reference_forward_f32(x, params):
    """Pure-JAX, full-f32 reference of the PyTorch forward (training-mode BN)."""
    (w1, b1, g1, be1, w2, b2, g2, be2, wo, bo) = params
    h = x.reshape(x.shape[0], -1).astype(jnp.float32)
    for (w, b, g, be) in ((w1, b1, g1, be1), (w2, b2, g2, be2)):
        h = h @ w + b
        h = jnp.maximum(h, 0.0)
        mean = jnp.mean(h, axis=0, keepdims=True)
        var = jnp.mean((h - mean) ** 2, axis=0, keepdims=True)
        h = g * (h - mean) / jnp.sqrt(var + EPS) + be
    return h @ wo + bo, h


def _reference_forward_bf16(x, params):
    """Pure-JAX reference with the kernel's precision choices (bf16 matmul operands, f32 acc/BN)."""
    (w1, b1, g1, be1, w2, b2, g2, be2, wo, bo) = params
    h = x.reshape(x.shape[0], -1).astype(jnp.float32)
    for (w, b, g, be) in ((w1, b1, g1, be1), (w2, b2, g2, be2)):
        h = jnp.dot(h.astype(jnp.bfloat16), w.astype(jnp.bfloat16),
                    preferred_element_type=jnp.float32) + b
        h = jnp.maximum(h, 0.0)
        mean = jnp.mean(h, axis=0, keepdims=True)
        c = h - mean
        var = jnp.mean(c * c, axis=0, keepdims=True)
        h = c * (g * jax.lax.rsqrt(var + EPS)) + be
    out = jnp.dot(h.astype(jnp.bfloat16), wo.astype(jnp.bfloat16),
                  preferred_element_type=jnp.float32) + bo
    return out, h


if __name__ == "__main__":
    key = jax.random.PRNGKey(0)
    k_x, k_p = jax.random.split(key)

    # small shapes: batch=8 (fills one sublane group; BN needs B>1),
    # input is (C=4, H=16, W=16) -> input_size = 1024
    B, C, H, W = 8, 4, 16, 16
    input_size = C * H * W
    output_size = 16
    hidden_sizes = (512, 256)

    x = jax.random.normal(k_x, (B, C, H, W), jnp.float32)
    params = init_params(k_p, input_size, output_size, hidden_sizes)
    packed = pack_params(params)

    out, hidden = mlp_forward(x, packed, out_dim=output_size)
    out, hidden = jax.block_until_ready((out, hidden))

    assert out.shape == (B, output_size) and hidden.shape == (B, hidden_sizes[-1])

    # Tight check: kernel vs a pure-JAX reference using the same bf16-weight numerics.
    ref_out_m, ref_hid_m = _reference_forward_bf16(x, params)
    assert jnp.allclose(out, ref_out_m, atol=5e-3, rtol=5e-3)
    assert jnp.allclose(hidden, ref_hid_m, atol=5e-3, rtol=5e-3)

    # Loose check: vs the full-f32 PyTorch-semantics forward (bf16 weight storage is the
    # intentional bandwidth/precision tradeoff; error is amplified a bit by batch-norm at B=8).
    ref_out_f, ref_hid_f = _reference_forward_f32(x, params)
    assert jnp.allclose(out, ref_out_f, atol=1e-1, rtol=1e-1)
    assert jnp.allclose(hidden, ref_hid_f, atol=1e-1, rtol=1e-1)

    print("KERNEL_OK")
</pallas_src>

<mosaic_0001>
module attributes {stable_mosaic.version = 11 : i64} {
  func.func @_mlp_kernel(%arg0: memref<8x1024xbf16, #tpu.memory_space<vmem>>, %arg1: memref<1024x512xbf16, #tpu.memory_space<vmem>>, %arg2: memref<512x256xbf16, #tpu.memory_space<vmem>>, %arg3: memref<256x16xbf16, #tpu.memory_space<vmem>>, %arg4: memref<3x896xf32, #tpu.memory_space<vmem>>, %arg5: memref<8x128xf32, #tpu.memory_space<vmem>>, %arg6: memref<8x256xf32, #tpu.memory_space<vmem>>) attributes {dimension_semantics = [], scalar_prefetch = 0 : i64, scratch_operands = 0 : i64, tpu.core_type = #tpu.core_type<tc>} {
    %c0 = arith.constant 0 : index
    %c0_0 = arith.constant 0 : index
    %0 = vector.load %arg4[%c0, %c0_0] : memref<3x896xf32, #tpu.memory_space<vmem>>, vector<3x896xf32>
    %c0_1 = arith.constant 0 : index
    %c0_2 = arith.constant 0 : index
    %1 = vector.load %arg0[%c0_1, %c0_2] : memref<8x1024xbf16, #tpu.memory_space<vmem>>, vector<8x1024xbf16>
    %c0_3 = arith.constant 0 : index
    %c0_4 = arith.constant 0 : index
    %2 = vector.load %arg1[%c0_3, %c0_4] : memref<1024x512xbf16, #tpu.memory_space<vmem>>, vector<1024x512xbf16>
    %cst = arith.constant dense<0.000000e+00> : vector<8x512xf32>
    %3 = tpu.matmul %1, %2, %cst {dimension_numbers = #tpu.dot_dimension_numbers<[1], [0], [0], [1], [0, 0, 1, 1], [], []>} : vector<8x1024xbf16>, vector<1024x512xbf16>, vector<8x512xf32> -> vector<8x512xf32>
    %4 = vector.extract_strided_slice %0 {offsets = [0, 0], sizes = [1, 512], strides = [1, 1]} : vector<3x896xf32> to vector<1x512xf32>
    %5 = vector.extract_strided_slice %0 {offsets = [1, 0], sizes = [1, 512], strides = [1, 1]} : vector<3x896xf32> to vector<1x512xf32>
    %6 = vector.extract_strided_slice %0 {offsets = [2, 0], sizes = [1, 512], strides = [1, 1]} : vector<3x896xf32> to vector<1x512xf32>
    %7 = vector.broadcast %4 : vector<1x512xf32> to vector<8x512xf32>
    %8 = arith.addf %3, %7 : vector<8x512xf32>
    %cst_5 = arith.constant 0.000000e+00 : f32
    %9 = vector.broadcast %cst_5 : f32 to vector<8x512xf32>
    %10 = arith.maximumf %8, %9 : vector<8x512xf32>
    %cst_6 = arith.constant dense<0.000000e+00> : vector<512xf32>
    %11 = vector.multi_reduction <add>, %10, %cst_6 [0] : vector<8x512xf32> to vector<512xf32>
    %12 = vector.shape_cast %11 : vector<512xf32> to vector<1x512xf32>
    %cst_7 = arith.constant 8.000000e+00 : f32
    %13 = vector.broadcast %cst_7 : f32 to vector<1x512xf32>
    %14 = arith.divf %12, %13 : vector<1x512xf32>
    %15 = vector.broadcast %14 : vector<1x512xf32> to vector<8x512xf32>
    %16 = arith.subf %10, %15 : vector<8x512xf32>
    %17 = arith.mulf %16, %16 : vector<8x512xf32>
    %cst_8 = arith.constant dense<0.000000e+00> : vector<512xf32>
    %18 = vector.multi_reduction <add>, %17, %cst_8 [0] : vector<8x512xf32> to vector<512xf32>
    %19 = vector.shape_cast %18 : vector<512xf32> to vector<1x512xf32>
    %cst_9 = arith.constant 8.000000e+00 : f32
    %20 = vector.broadcast %cst_9 : f32 to vector<1x512xf32>
    %21 = arith.divf %19, %20 : vector<1x512xf32>
    %cst_10 = arith.constant 9.99999974E-6 : f32
    %22 = vector.broadcast %cst_10 : f32 to vector<1x512xf32>
    %23 = arith.addf %21, %22 : vector<1x512xf32>
    %24 = math.rsqrt %23 : vector<1x512xf32>
    %25 = arith.mulf %5, %24 : vector<1x512xf32>
    %26 = vector.broadcast %25 : vector<1x512xf32> to vector<8x512xf32>
    %27 = arith.mulf %16, %26 : vector<8x512xf32>
    %28 = vector.broadcast %6 : vector<1x512xf32> to vector<8x512xf32>
    %29 = arith.addf %27, %28 : vector<8x512xf32>
    %30 = arith.truncf %29 : vector<8x512xf32> to vector<8x512xbf16>
    %c0_11 = arith.constant 0 : index
    %c0_12 = arith.constant 0 : index
    %31 = vector.load %arg2[%c0_11, %c0_12] : memref<512x256xbf16, #tpu.memory_space<vmem>>, vector<512x256xbf16>
    %cst_13 = arith.constant dense<0.000000e+00> : vector<8x256xf32>
    %32 = tpu.matmul %30, %31, %cst_13 {dimension_numbers = #tpu.dot_dimension_numbers<[1], [0], [0], [1], [0, 0, 1, 1], [], []>} : vector<8x512xbf16>, vector<512x256xbf16>, vector<8x256xf32> -> vector<8x256xf32>
    %33 = vector.extract_strided_slice %0 {offsets = [0, 512], sizes = [1, 256], strides = [1, 1]} : vector<3x896xf32> to vector<1x256xf32>
    %34 = vector.extract_strided_slice %0 {offsets = [1, 512], sizes = [1, 256], strides = [1, 1]} : vector<3x896xf32> to vector<1x256xf32>
    %35 = vector.extract_strided_slice %0 {offsets = [2, 512], sizes = [1, 256], strides = [1, 1]} : vector<3x896xf32> to vector<1x256xf32>
    %36 = vector.broadcast %33 : vector<1x256xf32> to vector<8x256xf32>
    %37 = arith.addf %32, %36 : vector<8x256xf32>
    %cst_14 = arith.constant 0.000000e+00 : f32
    %38 = vector.broadcast %cst_14 : f32 to vector<8x256xf32>
    %39 = arith.maximumf %37, %38 : vector<8x256xf32>
    %cst_15 = arith.constant dense<0.000000e+00> : vector<256xf32>
    %40 = vector.multi_reduction <add>, %39, %cst_15 [0] : vector<8x256xf32> to vector<256xf32>
    %41 = vector.shape_cast %40 : vector<256xf32> to vector<1x256xf32>
    %cst_16 = arith.constant 8.000000e+00 : f32
    %42 = vector.broadcast %cst_16 : f32 to vector<1x256xf32>
    %43 = arith.divf %41, %42 : vector<1x256xf32>
    %44 = vector.broadcast %43 : vector<1x256xf32> to vector<8x256xf32>
    %45 = arith.subf %39, %44 : vector<8x256xf32>
    %46 = arith.mulf %45, %45 : vector<8x256xf32>
    %cst_17 = arith.constant dense<0.000000e+00> : vector<256xf32>
    %47 = vector.multi_reduction <add>, %46, %cst_17 [0] : vector<8x256xf32> to vector<256xf32>
    %48 = vector.shape_cast %47 : vector<256xf32> to vector<1x256xf32>
    %cst_18 = arith.constant 8.000000e+00 : f32
    %49 = vector.broadcast %cst_18 : f32 to vector<1x256xf32>
    %50 = arith.divf %48, %49 : vector<1x256xf32>
    %cst_19 = arith.constant 9.99999974E-6 : f32
    %51 = vector.broadcast %cst_19 : f32 to vector<1x256xf32>
    %52 = arith.addf %50, %51 : vector<1x256xf32>
    %53 = math.rsqrt %52 : vector<1x256xf32>
    %54 = arith.mulf %34, %53 : vector<1x256xf32>
    %55 = vector.broadcast %54 : vector<1x256xf32> to vector<8x256xf32>
    %56 = arith.mulf %45, %55 : vector<8x256xf32>
    %57 = vector.broadcast %35 : vector<1x256xf32> to vector<8x256xf32>
    %58 = arith.addf %56, %57 : vector<8x256xf32>
    %c0_20 = arith.constant 0 : index
    %c0_21 = arith.constant 0 : index
    %59 = vector.load %arg6[%c0_20, %c0_21] : memref<8x256xf32, #tpu.memory_space<vmem>>, vector<8x256xf32>
    tpu.vector_store %arg6[%c0_20, %c0_21], %58 {strides = array<i32>} : memref<8x256xf32, #tpu.memory_space<vmem>>, vector<8x256xf32>,
    %60 = arith.truncf %58 : vector<8x256xf32> to vector<8x256xbf16>
    %c0_22 = arith.constant 0 : index
    %c0_23 = arith.constant 0 : index
    %61 = vector.load %arg3[%c0_22, %c0_23] : memref<256x16xbf16, #tpu.memory_space<vmem>>, vector<256x16xbf16>
    %cst_24 = arith.constant dense<0.000000e+00> : vector<8x16xf32>
    %62 = tpu.matmul %60, %61, %cst_24 {dimension_numbers = #tpu.dot_dimension_numbers<[1], [0], [0], [1], [0, 0, 1, 1], [], []>} : vector<8x256xbf16>, vector<256x16xbf16>, vector<8x16xf32> -> vector<8x16xf32>
    %63 = vector.extract_strided_slice %0 {offsets = [0, 768], sizes = [1, 16], strides = [1, 1]} : vector<3x896xf32> to vector<1x16xf32>
    %64 = vector.broadcast %63 : vector<1x16xf32> to vector<8x16xf32>
    %65 = arith.addf %62, %64 : vector<8x16xf32>
    %cst_25 = arith.constant 0.000000e+00 : f32
    %66 = vector.broadcast %cst_25 : f32 to vector<8x128xf32>
    %c0_26 = arith.constant 0 : index
    %c0_27 = arith.constant 0 : index
    %67 = vector.load %arg5[%c0_26, %c0_27] : memref<8x128xf32, #tpu.memory_space<vmem>>, vector<8x128xf32>
    tpu.vector_store %arg5[%c0_26, %c0_27], %66 {strides = array<i32>} : memref<8x128xf32, #tpu.memory_space<vmem>>, vector<8x128xf32>,
    %c0_28 = arith.constant 0 : index
    %c0_29 = arith.constant 0 : index
    %68 = vector.load %arg5[%c0_28, %c0_29] : memref<8x128xf32, #tpu.memory_space<vmem>>, vector<8x16xf32>
    tpu.vector_store %arg5[%c0_28, %c0_29], %65 {strides = array<i32>} : memref<8x128xf32, #tpu.memory_space<vmem>>, vector<8x16xf32>,
    return
  }
}

</mosaic_0001>

<llo_original>
// kernel: mlp_forward.1
$region0: #{mlp_forward.1}
  #allocation0 [shape = 'u32[]', space=smem, size = 0x4, offset = 0x4, fixed_abs, tag = 'smem constant byte address 0x4 - core index']
  #allocation1 [shape = 'u32[72,128]{1,0:T(1,128)}', space=vmem, size = 0x9000, scoped, tag = 'internal scratch']
  %s0 = inlined_call_operand.vmem [shape: bf16[8,1024], index: 0, kind: input, shape index: {}]
  %s1 = inlined_call_operand.hbm [shape: bf16[1024,512], index: 1, kind: input, shape index: {}]
  %s2 = inlined_call_operand.vmem [shape: bf16[512,256], index: 2, kind: input, shape index: {}]
  %s3 = inlined_call_operand.vmem [shape: bf16[256,16], index: 3, kind: input, shape index: {}]
  %s4 = inlined_call_operand.vmem [shape: f32[3,896], index: 4, kind: input, shape index: {}]
  %s5 = inlined_call_operand.hbm [shape: f32[8,128], index: 5, kind: output, shape index: {0}]
  %s6 = inlined_call_operand.hbm [shape: f32[8,256], index: 6, kind: output, shape index: {1}]
  %7 = xla_tuple %s5, %s6
  %s8 = sld [smem:[#allocation0]]
  $region42: #{mlp_forward.1} parent=0
    _
  %s10 = ssub.s32 1, %s8
  %s11 = scalar_select 0, %s10, %s8
  $region1: #{mlp_forward.1} parent=0
    #allocation2 [shape = 'u8[1048576]{0}', space=vmem, size = 0x100000, scoped, tag = 'input window, operand 1, single buffered']
    #allocation3 [shape = 's32[1]{0}', space=sflag, size = 0x4, scoped, tag = 'scoped memory for mlp_forward.1']
    #allocation4 [shape = 's32[1]{0}', space=sflag, size = 0x4, scoped, tag = 'scoped memory for mlp_forward.1']
    #allocation5 [shape = 'u8[4096]{0}', space=vmem, size = 0x1000, scoped, tag = 'output window, operand 0, single buffered']
    #allocation6 [shape = 'u8[8192]{0}', space=vmem, size = 0x2000, scoped, tag = 'output window, operand 1, single buffered']
    #allocation7 [shape = 's32[1]{0}', space=sflag, size = 0x4, scoped, tag = 'scoped memory for mlp_forward.1']
    %12 = vsyncpa [#allocation3], 0
    %13 = vsyncpa [#allocation4], 0
    %14 = vsyncpa [#allocation7], 0
    // Predicated region
    $region2: #{mlp_forward.1} parent=1 // pred_check
      _
    $region3: #{mlp_forward.1} parent=1 // pred_check_branch
      %16 = sbr.rel (0) target = $region5
    $region4: #{mlp_forward.1} parent=1 // pred_region
      _
    $region5: #{mlp_forward.1} parent=1 // pred_fallthru
      _
    // Predicated region
    $region6: #{mlp_forward.1} parent=1 // pred_check
      _
    $region7: #{mlp_forward.1} parent=1 // pred_check_branch
      %18 = sbr.rel (0) target = $region9
    $region8: #{mlp_forward.1} parent=1 // pred_region
      %20 = vsyncadd [#allocation3], 0
      %s21 = sshll.u32 %s1, 4
      %s22 = int_to_ptr.hbm [resolvable:$true] %s21
      %s23 = sshll.u32 [#allocation2], 4
      %s24 = int_to_ptr.vmem [resolvable:$true] %s23
      %29 = dma.hbm_to_vmem [thread:$0]  %s22, 32768, %s24, [#allocation3], 256, 256, 16
    $region9: #{mlp_forward.1} parent=1 // pred_fallthru
      _
    // Predicated region
    $region10: #{mlp_forward.1} parent=1 // pred_check
      _
    $region11: #{mlp_forward.1} parent=1 // pred_check_branch
      %31 = sbr.rel (0) target = $region13
    $region12: #{mlp_forward.1} parent=1 // pred_region
      _
    $region13: #{mlp_forward.1} parent=1 // pred_fallthru
      _
    // Predicated region
    $region14: #{mlp_forward.1} parent=1 // pred_check
      _
    $region15: #{mlp_forward.1} parent=1 // pred_check_branch
      %33 = sbr.rel (0) target = $region17
    $region16: #{mlp_forward.1} parent=1 // pred_region
      _
    $region17: #{mlp_forward.1} parent=1 // pred_fallthru
      _
    // Predicated region
    $region18: #{mlp_forward.1} parent=1 // pred_check
      _
    $region19: #{mlp_forward.1} parent=1 // pred_check_branch
      %35 = sbr.rel (0) target = $region21
    $region20: #{mlp_forward.1} parent=1 // pred_region
      _
    $region21: #{mlp_forward.1} parent=1 // pred_fallthru
      _
    // Predicated region
    $region22: #{mlp_forward.1} parent=1 // pred_check
      _
    $region23: #{mlp_forward.1} parent=1 // pred_check_branch
      %37 = sbr.rel (0) target = $region25
    $region24: #{mlp_forward.1} parent=1 // pred_region
      %39 = dma.done [#allocation3], 32768
    $region25: #{mlp_forward.1} parent=1 // pred_fallthru
      _
    %v40 = vld [vmem:[%s4] sm:$0x77]
    %v41 = vld [vmem:[%s4 + $0x8] sm:$0x77]
    %v42 = vld [vmem:[%s4 + $0x10] sm:$0x77]
    %v43 = vld [vmem:[%s4 + $0x18] sm:$0x7]
    %v44 = vld [vmem:[%s0] sm:$0xff]
    %v45 = vld [vmem:[%s0 + $0x8] sm:$0xff]
    %v46 = vld [vmem:[%s0 + $0x10] sm:$0xff]
    %v47 = vld [vmem:[%s0 + $0x18] sm:$0xff]
    %v48 = vld [vmem:[#allocation2] sm:$0xff]
    %v49 = vld [vmem:[#allocation2 + $0x8] sm:$0xff]
    %v50 = vld [vmem:[#allocation2 + $0x10] sm:$0xff]
    %v51 = vld [vmem:[#allocation2 + $0x18] sm:$0xff]
    %v52 = vld [vmem:[#allocation2 + $0x20] sm:$0xff]
    %v53 = vld [vmem:[#allocation2 + $0x28] sm:$0xff]
    %v54 = vld [vmem:[#allocation2 + $0x30] sm:$0xff]
    %v55 = vld [vmem:[#allocation2 + $0x38] sm:$0xff]
    %v56 = vld [vmem:[#allocation2 + $0x40] sm:$0xff]
    %v57 = vld [vmem:[#allocation2 + $0x48] sm:$0xff]
    %v58 = vld [vmem:[#allocation2 + $0x50] sm:$0xff]
    %v59 = vld [vmem:[#allocation2 + $0x58] sm:$0xff]
    %v60 = vld [vmem:[#allocation2 + $0x60] sm:$0xff]
    %v61 = vld [vmem:[#allocation2 + $0x68] sm:$0xff]
    %v62 = vld [vmem:[#allocation2 + $0x70] sm:$0xff]
    %v63 = vld [vmem:[#allocation2 + $0x78] sm:$0xff]
    %v64 = vld [vmem:[#allocation2 + $0x80] sm:$0xff]
    %v65 = vld [vmem:[#allocation2 + $0x88] sm:$0xff]
    %v66 = vld [vmem:[#allocation2 + $0x90] sm:$0xff]
    %v67 = vld [vmem:[#allocation2 + $0x98] sm:$0xff]
    %v68 = vld [vmem:[#allocation2 + $0xa0] sm:$0xff]
    %v69 = vld [vmem:[#allocation2 + $0xa8] sm:$0xff]
    %v70 = vld [vmem:[#allocation2 + $0xb0] sm:$0xff]
    %v71 = vld [vmem:[#allocation2 + $0xb8] sm:$0xff]
    %v72 = vld [vmem:[#allocation2 + $0xc0] sm:$0xff]
    %v73 = vld [vmem:[#allocation2 + $0xc8] sm:$0xff]
    %v74 = vld [vmem:[#allocation2 + $0xd0] sm:$0xff]
    %v75 = vld [vmem:[#allocation2 + $0xd8] sm:$0xff]
    %v76 = vld [vmem:[#allocation2 + $0xe0] sm:$0xff]
    %v77 = vld [vmem:[#allocation2 + $0xe8] sm:$0xff]
    %v78 = vld [vmem:[#allocation2 + $0xf0] sm:$0xff]
    %v79 = vld [vmem:[#allocation2 + $0xf8] sm:$0xff]
    %v80 = vld [vmem:[#allocation2 + $0x100] sm:$0xff]
    %v81 = vld [vmem:[#allocation2 + $0x108] sm:$0xff]
    %v82 = vld [vmem:[#allocation2 + $0x110] sm:$0xff]
    %v83 = vld [vmem:[#allocation2 + $0x118] sm:$0xff]
    %v84 = vld [vmem:[#allocation2 + $0x120] sm:$0xff]
    %v85 = vld [vmem:[#allocation2 + $0x128] sm:$0xff]
    %v86 = vld [vmem:[#allocation2 + $0x130] sm:$0xff]
    %v87 = vld [vmem:[#allocation2 + $0x138] sm:$0xff]
    %v88 = vld [vmem:[#allocation2 + $0x140] sm:$0xff]
    %v89 = vld [vmem:[#allocation2 + $0x148] sm:$0xff]
    %v90 = vld [vmem:[#allocation2 + $0x150] sm:$0xff]
    %v91 = vld [vmem:[#allocation2 + $0x158] sm:$0xff]
    %v92 = vld [vmem:[#allocation2 + $0x160] sm:$0xff]
    %v93 = vld [vmem:[#allocation2 + $0x168] sm:$0xff]
    %v94 = vld [vmem:[#allocation2 + $0x170] sm:$0xff]
    %v95 = vld [vmem:[#allocation2 + $0x178] sm:$0xff]
    %v96 = vld [vmem:[#allocation2 + $0x180] sm:$0xff]
    %v97 = vld [vmem:[#allocation2 + $0x188] sm:$0xff]
    %v98 = vld [vmem:[#allocation2 + $0x190] sm:$0xff]
    %v99 = vld [vmem:[#allocation2 + $0x198] sm:$0xff]
    %v100 = vld [vmem:[#allocation2 + $0x1a0] sm:$0xff]
    %v101 = vld [vmem:[#allocation2 + $0x1a8] sm:$0xff]
    %v102 = vld [vmem:[#allocation2 + $0x1b0] sm:$0xff]
    %v103 = vld [vmem:[#allocation2 + $0x1b8] sm:$0xff]
    %v104 = vld [vmem:[#allocation2 + $0x1c0] sm:$0xff]
    %v105 = vld [vmem:[#allocation2 + $0x1c8] sm:$0xff]
    %v106 = vld [vmem:[#allocation2 + $0x1d0] sm:$0xff]
    %v107 = vld [vmem:[#allocation2 + $0x1d8] sm:$0xff]
    %v108 = vld [vmem:[#allocation2 + $0x1e0] sm:$0xff]
    %v109 = vld [vmem:[#allocation2 + $0x1e8] sm:$0xff]
    %v110 = vld [vmem:[#allocation2 + $0x1f0] sm:$0xff]
    %v111 = vld [vmem:[#allocation2 + $0x1f8] sm:$0xff]
    %v112 = vld [vmem:[#allocation2 + $0x200] sm:$0xff]
    %v113 = vld [vmem:[#allocation2 + $0x208] sm:$0xff]
    %v114 = vld [vmem:[#allocation2 + $0x210] sm:$0xff]
    %v115 = vld [vmem:[#allocation2 + $0x218] sm:$0xff]
    %v116 = vld [vmem:[#allocation2 + $0x220] sm:$0xff]
    %v117 = vld [vmem:[#allocation2 + $0x228] sm:$0xff]
    %v118 = vld [vmem:[#allocation2 + $0x230] sm:$0xff]
    %v119 = vld [vmem:[#allocation2 + $0x238] sm:$0xff]
    %v120 = vld [vmem:[#allocation2 + $0x240] sm:$0xff]
    %v121 = vld [vmem:[#allocation2 + $0x248] sm:$0xff]
    %v122 = vld [vmem:[#allocation2 + $0x250] sm:$0xff]
    %v123 = vld [vmem:[#allocation2 + $0x258] sm:$0xff]
    %v124 = vld [vmem:[#allocation2 + $0x260] sm:$0xff]
    %v125 = vld [vmem:[#allocation2 + $0x268] sm:$0xff]
    %v126 = vld [vmem:[#allocation2 + $0x270] sm:$0xff]
    %v127 = vld [vmem:[#allocation2 + $0x278] sm:$0xff]
    %v128 = vld [vmem:[#allocation2 + $0x280] sm:$0xff]
    %v129 = vld [vmem:[#allocation2 + $0x288] sm:$0xff]
    %v130 = vld [vmem:[#allocation2 + $0x290] sm:$0xff]
    %v131 = vld [vmem:[#allocation2 + $0x298] sm:$0xff]
    %v132 = vld [vmem:[#allocation2 + $0x2a0] sm:$0xff]
    %v133 = vld [vmem:[#allocation2 + $0x2a8] sm:$0xff]
    %v134 = vld [vmem:[#allocation2 + $0x2b0] sm:$0xff]
    %v135 = vld [vmem:[#allocation2 + $0x2b8] sm:$0xff]
    %v136 = vld [vmem:[#allocation2 + $0x2c0] sm:$0xff]
    %v137 = vld [vmem:[#allocation2 + $0x2c8] sm:$0xff]
    %v138 = vld [vmem:[#allocation2 + $0x2d0] sm:$0xff]
    %v139 = vld [vmem:[#allocation2 + $0x2d8] sm:$0xff]
    %v140 = vld [vmem:[#allocation2 + $0x2e0] sm:$0xff]
    %v141 = vld [vmem:[#allocation2 + $0x2e8] sm:$0xff]
    %v142 = vld [vmem:[#allocation2 + $0x2f0] sm:$0xff]
    %v143 = vld [vmem:[#allocation2 + $0x2f8] sm:$0xff]
    %v144 = vld [vmem:[#allocation2 + $0x300] sm:$0xff]
    %v145 = vld [vmem:[#allocation2 + $0x308] sm:$0xff]
    %v146 = vld [vmem:[#allocation2 + $0x310] sm:$0xff]
    %v147 = vld [vmem:[#allocation2 + $0x318] sm:$0xff]
    %v148 = vld [vmem:[#allocation2 + $0x320] sm:$0xff]
    %v149 = vld [vmem:[#allocation2 + $0x328] sm:$0xff]
    %v150 = vld [vmem:[#allocation2 + $0x330] sm:$0xff]
    %v151 = vld [vmem:[#allocation2 + $0x338] sm:$0xff]
    %v152 = vld [vmem:[#allocation2 + $0x340] sm:$0xff]
    %v153 = vld [vmem:[#allocation2 + $0x348] sm:$0xff]
    %v154 = vld [vmem:[#allocation2 + $0x350] sm:$0xff]
    %v155 = vld [vmem:[#allocation2 + $0x358] sm:$0xff]
    %v156 = vld [vmem:[#allocation2 + $0x360] sm:$0xff]
    %v157 = vld [vmem:[#allocation2 + $0x368] sm:$0xff]
    %v158 = vld [vmem:[#allocation2 + $0x370] sm:$0xff]
    %v159 = vld [vmem:[#allocation2 + $0x378] sm:$0xff]
    %v160 = vld [vmem:[#allocation2 + $0x380] sm:$0xff]
    %v161 = vld [vmem:[#allocation2 + $0x388] sm:$0xff]
    %v162 = vld [vmem:[#allocation2 + $0x390] sm:$0xff]
    %v163 = vld [vmem:[#allocation2 + $0x398] sm:$0xff]
    %v164 = vld [vmem:[#allocation2 + $0x3a0] sm:$0xff]
    %v165 = vld [vmem:[#allocation2 + $0x3a8] sm:$0xff]
    %v166 = vld [vmem:[#allocation2 + $0x3b0] sm:$0xff]
    %v167 = vld [vmem:[#allocation2 + $0x3b8] sm:$0xff]
    %v168 = vld [vmem:[#allocation2 + $0x3c0] sm:$0xff]
    %v169 = vld [vmem:[#allocation2 + $0x3c8] sm:$0xff]
    %v170 = vld [vmem:[#allocation2 + $0x3d0] sm:$0xff]
    %v171 = vld [vmem:[#allocation2 + $0x3d8] sm:$0xff]
    %v172 = vld [vmem:[#allocation2 + $0x3e0] sm:$0xff]
    %v173 = vld [vmem:[#allocation2 + $0x3e8] sm:$0xff]
    %v174 = vld [vmem:[#allocation2 + $0x3f0] sm:$0xff]
    %v175 = vld [vmem:[#allocation2 + $0x3f8] sm:$0xff]
    %v176 = vld [vmem:[#allocation2 + $0x400] sm:$0xff]
    %v177 = vld [vmem:[#allocation2 + $0x408] sm:$0xff]
    %v178 = vld [vmem:[#allocation2 + $0x410] sm:$0xff]
    %v179 = vld [vmem:[#allocation2 + $0x418] sm:$0xff]
    %v180 = vld [vmem:[#allocation2 + $0x420] sm:$0xff]
    %v181 = vld [vmem:[#allocation2 + $0x428] sm:$0xff]
    %v182 = vld [vmem:[#allocation2 + $0x430] sm:$0xff]
    %v183 = vld [vmem:[#allocation2 + $0x438] sm:$0xff]
    %v184 = vld [vmem:[#allocation2 + $0x440] sm:$0xff]
    %v185 = vld [vmem:[#allocation2 + $0x448] sm:$0xff]
    %v186 = vld [vmem:[#allocation2 + $0x450] sm:$0xff]
    %v187 = vld [vmem:[#allocation2 + $0x458] sm:$0xff]
    %v188 = vld [vmem:[#allocation2 + $0x460] sm:$0xff]
    %v189 = vld [vmem:[#allocation2 + $0x468] sm:$0xff]
    %v190 = vld [vmem:[#allocation2 + $0x470] sm:$0xff]
    %v191 = vld [vmem:[#allocation2 + $0x478] sm:$0xff]
    %v192 = vld [vmem:[#allocation2 + $0x480] sm:$0xff]
    %v193 = vld [vmem:[#allocation2 + $0x488] sm:$0xff]
    %v194 = vld [vmem:[#allocation2 + $0x490] sm:$0xff]
    %v195 = vld [vmem:[#allocation2 + $0x498] sm:$0xff]
    %v196 = vld [vmem:[#allocation2 + $0x4a0] sm:$0xff]
    %v197 = vld [vmem:[#allocation2 + $0x4a8] sm:$0xff]
    %v198 = vld [vmem:[#allocation2 + $0x4b0] sm:$0xff]
    %v199 = vld [vmem:[#allocation2 + $0x4b8] sm:$0xff]
    %v200 = vld [vmem:[#allocation2 + $0x4c0] sm:$0xff]
    %v201 = vld [vmem:[#allocation2 + $0x4c8] sm:$0xff]
    %v202 = vld [vmem:[#allocation2 + $0x4d0] sm:$0xff]
    %v203 = vld [vmem:[#allocation2 + $0x4d8] sm:$0xff]
    %v204 = vld [vmem:[#allocation2 + $0x4e0] sm:$0xff]
    %v205 = vld [vmem:[#allocation2 + $0x4e8] sm:$0xff]
    %v206 = vld [vmem:[#allocation2 + $0x4f0] sm:$0xff]
    %v207 = vld [vmem:[#allocation2 + $0x4f8] sm:$0xff]
    %v208 = vld [vmem:[#allocation2 + $0x500] sm:$0xff]
    %v209 = vld [vmem:[#allocation2 + $0x508] sm:$0xff]
    %v210 = vld [vmem:[#allocation2 + $0x510] sm:$0xff]
    %v211 = vld [vmem:[#allocation2 + $0x518] sm:$0xff]
    %v212 = vld [vmem:[#allocation2 + $0x520] sm:$0xff]
    %v213 = vld [vmem:[#allocation2 + $0x528] sm:$0xff]
    %v214 = vld [vmem:[#allocation2 + $0x530] sm:$0xff]
    %v215 = vld [vmem:[#allocation2 + $0x538] sm:$0xff]
    %v216 = vld [vmem:[#allocation2 + $0x540] sm:$0xff]
    %v217 = vld [vmem:[#allocation2 + $0x548] sm:$0xff]
    %v218 = vld [vmem:[#allocation2 + $0x550] sm:$0xff]
    %v219 = vld [vmem:[#allocation2 + $0x558] sm:$0xff]
    %v220 = vld [vmem:[#allocation2 + $0x560] sm:$0xff]
    %v221 = vld [vmem:[#allocation2 + $0x568] sm:$0xff]
    %v222 = vld [vmem:[#allocation2 + $0x570] sm:$0xff]
    %v223 = vld [vmem:[#allocation2 + $0x578] sm:$0xff]
    %v224 = vld [vmem:[#allocation2 + $0x580] sm:$0xff]
    %v225 = vld [vmem:[#allocation2 + $0x588] sm:$0xff]
    %v226 = vld [vmem:[#allocation2 + $0x590] sm:$0xff]
    %v227 = vld [vmem:[#allocation2 + $0x598] sm:$0xff]
    %v228 = vld [vmem:[#allocation2 + $0x5a0] sm:$0xff]
    %v229 = vld [vmem:[#allocation2 + $0x5a8] sm:$0xff]
    %v230 = vld [vmem:[#allocation2 + $0x5b0] sm:$0xff]
    %v231 = vld [vmem:[#allocation2 + $0x5b8] sm:$0xff]
    %v232 = vld [vmem:[#allocation2 + $0x5c0] sm:$0xff]
    %v233 = vld [vmem:[#allocation2 + $0x5c8] sm:$0xff]
    %v234 = vld [vmem:[#allocation2 + $0x5d0] sm:$0xff]
    %v235 = vld [vmem:[#allocation2 + $0x5d8] sm:$0xff]
    %v236 = vld [vmem:[#allocation2 + $0x5e0] sm:$0xff]
    %v237 = vld [vmem:[#allocation2 + $0x5e8] sm:$0xff]
    %v238 = vld [vmem:[#allocation2 + $0x5f0] sm:$0xff]
    %v239 = vld [vmem:[#allocation2 + $0x5f8] sm:$0xff]
    %v240 = vld [vmem:[#allocation2 + $0x600] sm:$0xff]
    %v241 = vld [vmem:[#allocation2 + $0x608] sm:$0xff]
    %v242 = vld [vmem:[#allocation2 + $0x610] sm:$0xff]
    %v243 = vld [vmem:[#allocation2 + $0x618] sm:$0xff]
    %v244 = vld [vmem:[#allocation2 + $0x620] sm:$0xff]
    %v245 = vld [vmem:[#allocation2 + $0x628] sm:$0xff]
    %v246 = vld [vmem:[#allocation2 + $0x630] sm:$0xff]
    %v247 = vld [vmem:[#allocation2 + $0x638] sm:$0xff]
    %v248 = vld [vmem:[#allocation2 + $0x640] sm:$0xff]
    %v249 = vld [vmem:[#allocation2 + $0x648] sm:$0xff]
    %v250 = vld [vmem:[#allocation2 + $0x650] sm:$0xff]
    %v251 = vld [vmem:[#allocation2 + $0x658] sm:$0xff]
    %v252 = vld [vmem:[#allocation2 + $0x660] sm:$0xff]
    %v253 = vld [vmem:[#allocation2 + $0x668] sm:$0xff]
    %v254 = vld [vmem:[#allocation2 + $0x670] sm:$0xff]
    %v255 = vld [vmem:[#allocation2 + $0x678] sm:$0xff]
    %v256 = vld [vmem:[#allocation2 + $0x680] sm:$0xff]
    %v257 = vld [vmem:[#allocation2 + $0x688] sm:$0xff]
    %v258 = vld [vmem:[#allocation2 + $0x690] sm:$0xff]
    %v259 = vld [vmem:[#allocation2 + $0x698] sm:$0xff]
    %v260 = vld [vmem:[#allocation2 + $0x6a0] sm:$0xff]
    %v261 = vld [vmem:[#allocation2 + $0x6a8] sm:$0xff]
    %v262 = vld [vmem:[#allocation2 + $0x6b0] sm:$0xff]
    %v263 = vld [vmem:[#allocation2 + $0x6b8] sm:$0xff]
    %v264 = vld [vmem:[#allocation2 + $0x6c0] sm:$0xff]
    %v265 = vld [vmem:[#allocation2 + $0x6c8] sm:$0xff]
    %v266 = vld [vmem:[#allocation2 + $0x6d0] sm:$0xff]
    %v267 = vld [vmem:[#allocation2 + $0x6d8] sm:$0xff]
    %v268 = vld [vmem:[#allocation2 + $0x6e0] sm:$0xff]
    %v269 = vld [vmem:[#allocation2 + $0x6e8] sm:$0xff]
    %v270 = vld [vmem:[#allocation2 + $0x6f0] sm:$0xff]
    %v271 = vld [vmem:[#allocation2 + $0x6f8] sm:$0xff]
    %v272 = vld [vmem:[#allocation2 + $0x700] sm:$0xff]
    %v273 = vld [vmem:[#allocation2 + $0x708] sm:$0xff]
    %v274 = vld [vmem:[#allocation2 + $0x710] sm:$0xff]
    %v275 = vld [vmem:[#allocation2 + $0x718] sm:$0xff]
    %v276 = vld [vmem:[#allocation2 + $0x720] sm:$0xff]
    %v277 = vld [vmem:[#allocation2 + $0x728] sm:$0xff]
    %v278 = vld [vmem:[#allocation2 + $0x730] sm:$0xff]
    %v279 = vld [vmem:[#allocation2 + $0x738] sm:$0xff]
    %v280 = vld [vmem:[#allocation2 + $0x740] sm:$0xff]
    %v281 = vld [vmem:[#allocation2 + $0x748] sm:$0xff]
    %v282 = vld [vmem:[#allocation2 + $0x750] sm:$0xff]
    %v283 = vld [vmem:[#allocation2 + $0x758] sm:$0xff]
    %v284 = vld [vmem:[#allocation2 + $0x760] sm:$0xff]
    %v285 = vld [vmem:[#allocation2 + $0x768] sm:$0xff]
    %v286 = vld [vmem:[#allocation2 + $0x770] sm:$0xff]
    %v287 = vld [vmem:[#allocation2 + $0x778] sm:$0xff]
    %v288 = vld [vmem:[#allocation2 + $0x780] sm:$0xff]
    %v289 = vld [vmem:[#allocation2 + $0x788] sm:$0xff]
    %v290 = vld [vmem:[#allocation2 + $0x790] sm:$0xff]
    %v291 = vld [vmem:[#allocation2 + $0x798] sm:$0xff]
    %v292 = vld [vmem:[#allocation2 + $0x7a0] sm:$0xff]
    %v293 = vld [vmem:[#allocation2 + $0x7a8] sm:$0xff]
    %v294 = vld [vmem:[#allocation2 + $0x7b0] sm:$0xff]
    %v295 = vld [vmem:[#allocation2 + $0x7b8] sm:$0xff]
    %v296 = vld [vmem:[#allocation2 + $0x7c0] sm:$0xff]
    %v297 = vld [vmem:[#allocation2 + $0x7c8] sm:$0xff]
    %v298 = vld [vmem:[#allocation2 + $0x7d0] sm:$0xff]
    %v299 = vld [vmem:[#allocation2 + $0x7d8] sm:$0xff]
    %v300 = vld [vmem:[#allocation2 + $0x7e0] sm:$0xff]
    %v301 = vld [vmem:[#allocation2 + $0x7e8] sm:$0xff]
    %v302 = vld [vmem:[#allocation2 + $0x7f0] sm:$0xff]
    %v303 = vld [vmem:[#allocation2 + $0x7f8] sm:$0xff]
    %v306 = vperm.slane %v40, 0
    %v307 = vperm.slane %v40, 4
    %v308 = vperm.slane %v41, 0
    %v309 = vperm.slane %v41, 4
    %v314 = vperm.slane %v306, 0
    %v315 = vperm.slane %v307, 0
    %v316 = vperm.slane %v308, 0
    %v317 = vperm.slane %v309, 0
    %v322 = vunpack.c.l.b16 %v44
    %v323 = vunpack.c.h.b16 %v44
    %v324 = vunpack.c.l.b16 %v45
    %v325 = vunpack.c.h.b16 %v45
    %v326 = vunpack.c.l.b16 %v46
    %v327 = vunpack.c.h.b16 %v46
    %v328 = vunpack.c.l.b16 %v47
    %v329 = vunpack.c.h.b16 %v47
    %v330 = vpack.c.b16 %v322, %v322
    %v331 = vpack.c.b16 %v323, %v323
    %v332 = vpack.c.b16 %v324, %v324
    %v333 = vpack.c.b16 %v325, %v325
    %v334 = vpack.c.b16 %v326, %v326
    %v335 = vpack.c.b16 %v327, %v327
    %v336 = vpack.c.b16 %v328, %v328
    %v337 = vpack.c.b16 %v329, %v329
    %v602 = vunpack.c.l.b16 %v48
    %v603 = vunpack.c.h.b16 %v48
    %v604 = vunpack.c.l.b16 %v49
    %v605 = vunpack.c.h.b16 %v49
    %v606 = vunpack.c.l.b16 %v50
    %v607 = vunpack.c.h.b16 %v50
    %v608 = vunpack.c.l.b16 %v51
    %v609 = vunpack.c.h.b16 %v51
    %v610 = vunpack.c.l.b16 %v52
    %v611 = vunpack.c.h.b16 %v52
    %v612 = vunpack.c.l.b16 %v53
    %v613 = vunpack.c.h.b16 %v53
    %v614 = vunpack.c.l.b16 %v54
    %v615 = vunpack.c.h.b16 %v54
    %v616 = vunpack.c.l.b16 %v55
    %v617 = vunpack.c.h.b16 %v55
    %v618 = vunpack.c.l.b16 %v56
    %v619 = vunpack.c.h.b16 %v56
    %v620 = vunpack.c.l.b16 %v57
    %v621 = vunpack.c.h.b16 %v57
    %v622 = vunpack.c.l.b16 %v58
    %v623 = vunpack.c.h.b16 %v58
    %v624 = vunpack.c.l.b16 %v59
    %v625 = vunpack.c.h.b16 %v59
    %v626 = vunpack.c.l.b16 %v60
    %v627 = vunpack.c.h.b16 %v60
    %v628 = vunpack.c.l.b16 %v61
    %v629 = vunpack.c.h.b16 %v61
    %v630 = vunpack.c.l.b16 %v62
    %v631 = vunpack.c.h.b16 %v62
    %v632 = vunpack.c.l.b16 %v63
    %v633 = vunpack.c.h.b16 %v63
    %v634 = vunpack.c.l.b16 %v64
    %v635 = vunpack.c.h.b16 %v64
    %v636 = vunpack.c.l.b16 %v65
    %v637 = vunpack.c.h.b16 %v65
    %v638 = vunpack.c.l.b16 %v66
    %v639 = vunpack.c.h.b16 %v66
    %v640 = vunpack.c.l.b16 %v67
    %v641 = vunpack.c.h.b16 %v67
    %v642 = vunpack.c.l.b16 %v68
    %v643 = vunpack.c.h.b16 %v68
    %v644 = vunpack.c.l.b16 %v69
    %v645 = vunpack.c.h.b16 %v69
    %v646 = vunpack.c.l.b16 %v70
    %v647 = vunpack.c.h.b16 %v70
    %v648 = vunpack.c.l.b16 %v71
    %v649 = vunpack.c.h.b16 %v71
    %v650 = vunpack.c.l.b16 %v72
    %v651 = vunpack.c.h.b16 %v72
    %v652 = vunpack.c.l.b16 %v73
    %v653 = vunpack.c.h.b16 %v73
    %v654 = vunpack.c.l.b16 %v74
    %v655 = vunpack.c.h.b16 %v74
    %v656 = vunpack.c.l.b16 %v75
    %v657 = vunpack.c.h.b16 %v75
    %v658 = vunpack.c.l.b16 %v76
    %v659 = vunpack.c.h.b16 %v76
    %v660 = vunpack.c.l.b16 %v77
    %v661 = vunpack.c.h.b16 %v77
    %v662 = vunpack.c.l.b16 %v78
    %v663 = vunpack.c.h.b16 %v78
    %v664 = vunpack.c.l.b16 %v79
    %v665 = vunpack.c.h.b16 %v79
    %v666 = vunpack.c.l.b16 %v80
    %v667 = vunpack.c.h.b16 %v80
    %v668 = vunpack.c.l.b16 %v81
    %v669 = vunpack.c.h.b16 %v81
    %v670 = vunpack.c.l.b16 %v82
    %v671 = vunpack.c.h.b16 %v82
    %v672 = vunpack.c.l.b16 %v83
    %v673 = vunpack.c.h.b16 %v83
    %v674 = vunpack.c.l.b16 %v84
    %v675 = vunpack.c.h.b16 %v84
    %v676 = vunpack.c.l.b16 %v85
    %v677 = vunpack.c.h.b16 %v85
    %v678 = vunpack.c.l.b16 %v86
    %v679 = vunpack.c.h.b16 %v86
    %v680 = vunpack.c.l.b16 %v87
    %v681 = vunpack.c.h.b16 %v87
    %v682 = vunpack.c.l.b16 %v88
    %v683 = vunpack.c.h.b16 %v88
    %v684 = vunpack.c.l.b16 %v89
    %v685 = vunpack.c.h.b16 %v89
    %v686 = vunpack.c.l.b16 %v90
    %v687 = vunpack.c.h.b16 %v90
    %v688 = vunpack.c.l.b16 %v91
    %v689 = vunpack.c.h.b16 %v91
    %v690 = vunpack.c.l.b16 %v92
    %v691 = vunpack.c.h.b16 %v92
    %v692 = vunpack.c.l.b16 %v93
    %v693 = vunpack.c.h.b16 %v93
    %v694 = vunpack.c.l.b16 %v94
    %v695 = vunpack.c.h.b16 %v94
    %v696 = vunpack.c.l.b16 %v95
    %v697 = vunpack.c.h.b16 %v95
    %v698 = vunpack.c.l.b16 %v96
    %v699 = vunpack.c.h.b16 %v96
    %v700 = vunpack.c.l.b16 %v97
    %v701 = vunpack.c.h.b16 %v97
    %v702 = vunpack.c.l.b16 %v98
    %v703 = vunpack.c.h.b16 %v98
    %v704 = vunpack.c.l.b16 %v99
    %v705 = vunpack.c.h.b16 %v99
    %v706 = vunpack.c.l.b16 %v100
    %v707 = vunpack.c.h.b16 %v100
    %v708 = vunpack.c.l.b16 %v101
    %v709 = vunpack.c.h.b16 %v101
    %v710 = vunpack.c.l.b16 %v102
    %v711 = vunpack.c.h.b16 %v102
    %v712 = vunpack.c.l.b16 %v103
    %v713 = vunpack.c.h.b16 %v103
    %v714 = vunpack.c.l.b16 %v104
    %v715 = vunpack.c.h.b16 %v104
    %v716 = vunpack.c.l.b16 %v105
    %v717 = vunpack.c.h.b16 %v105
    %v718 = vunpack.c.l.b16 %v106
    %v719 = vunpack.c.h.b16 %v106
    %v720 = vunpack.c.l.b16 %v107
    %v721 = vunpack.c.h.b16 %v107
    %v722 = vunpack.c.l.b16 %v108
    %v723 = vunpack.c.h.b16 %v108
    %v724 = vunpack.c.l.b16 %v109
    %v725 = vunpack.c.h.b16 %v109
    %v726 = vunpack.c.l.b16 %v110
    %v727 = vunpack.c.h.b16 %v110
    %v728 = vunpack.c.l.b16 %v111
    %v729 = vunpack.c.h.b16 %v111
    %v730 = vunpack.c.l.b16 %v112
    %v731 = vunpack.c.h.b16 %v112
    %v732 = vunpack.c.l.b16 %v113
    %v733 = vunpack.c.h.b16 %v113
    %v734 = vunpack.c.l.b16 %v114
    %v735 = vunpack.c.h.b16 %v114
    %v736 = vunpack.c.l.b16 %v115
    %v737 = vunpack.c.h.b16 %v115
    %v738 = vunpack.c.l.b16 %v116
    %v739 = vunpack.c.h.b16 %v116
    %v740 = vunpack.c.l.b16 %v117
    %v741 = vunpack.c.h.b16 %v117
    %v742 = vunpack.c.l.b16 %v118
    %v743 = vunpack.c.h.b16 %v118
    %v744 = vunpack.c.l.b16 %v119
    %v745 = vunpack.c.h.b16 %v119
    %v746 = vunpack.c.l.b16 %v120
    %v747 = vunpack.c.h.b16 %v120
    %v748 = vunpack.c.l.b16 %v121
    %v749 = vunpack.c.h.b16 %v121
    %v750 = vunpack.c.l.b16 %v122
    %v751 = vunpack.c.h.b16 %v122
    %v752 = vunpack.c.l.b16 %v123
    %v753 = vunpack.c.h.b16 %v123
    %v754 = vunpack.c.l.b16 %v124
    %v755 = vunpack.c.h.b16 %v124
    %v756 = vunpack.c.l.b16 %v125
    %v757 = vunpack.c.h.b16 %v125
    %v758 = vunpack.c.l.b16 %v126
    %v759 = vunpack.c.h.b16 %v126
    %v760 = vunpack.c.l.b16 %v127
    %v761 = vunpack.c.h.b16 %v127
    %v762 = vunpack.c.l.b16 %v128
    %v763 = vunpack.c.h.b16 %v128
    %v764 = vunpack.c.l.b16 %v129
    %v765 = vunpack.c.h.b16 %v129
    %v766 = vunpack.c.l.b16 %v130
    %v767 = vunpack.c.h.b16 %v130
    %v768 = vunpack.c.l.b16 %v131
    %v769 = vunpack.c.h.b16 %v131
    %v770 = vunpack.c.l.b16 %v132
    %v771 = vunpack.c.h.b16 %v132
    %v772 = vunpack.c.l.b16 %v133
    %v773 = vunpack.c.h.b16 %v133
    %v774 = vunpack.c.l.b16 %v134
    %v775 = vunpack.c.h.b16 %v134
    %v776 = vunpack.c.l.b16 %v135
    %v777 = vunpack.c.h.b16 %v135
    %v778 = vunpack.c.l.b16 %v136
    %v779 = vunpack.c.h.b16 %v136
    %v780 = vunpack.c.l.b16 %v137
    %v781 = vunpack.c.h.b16 %v137
    %v782 = vunpack.c.l.b16 %v138
    %v783 = vunpack.c.h.b16 %v138
    %v784 = vunpack.c.l.b16 %v139
    %v785 = vunpack.c.h.b16 %v139
    %v786 = vunpack.c.l.b16 %v140
    %v787 = vunpack.c.h.b16 %v140
    %v788 = vunpack.c.l.b16 %v141
    %v789 = vunpack.c.h.b16 %v141
    %v790 = vunpack.c.l.b16 %v142
    %v791 = vunpack.c.h.b16 %v142
    %v792 = vunpack.c.l.b16 %v143
    %v793 = vunpack.c.h.b16 %v143
    %v794 = vunpack.c.l.b16 %v144
    %v795 = vunpack.c.h.b16 %v144
    %v796 = vunpack.c.l.b16 %v145
    %v797 = vunpack.c.h.b16 %v145
    %v798 = vunpack.c.l.b16 %v146
    %v799 = vunpack.c.h.b16 %v146
    %v800 = vunpack.c.l.b16 %v147
    %v801 = vunpack.c.h.b16 %v147
    %v802 = vunpack.c.l.b16 %v148
    %v803 = vunpack.c.h.b16 %v148
    %v804 = vunpack.c.l.b16 %v149
    %v805 = vunpack.c.h.b16 %v149
    %v806 = vunpack.c.l.b16 %v150
    %v807 = vunpack.c.h.b16 %v150
    %v808 = vunpack.c.l.b16 %v151
    %v809 = vunpack.c.h.b16 %v151
    %v810 = vunpack.c.l.b16 %v152
    %v811 = vunpack.c.h.b16 %v152
    %v812 = vunpack.c.l.b16 %v153
    %v813 = vunpack.c.h.b16 %v153
    %v814 = vunpack.c.l.b16 %v154
    %v815 = vunpack.c.h.b16 %v154
    %v816 = vunpack.c.l.b16 %v155
    %v817 = vunpack.c.h.b16 %v155
    %v818 = vunpack.c.l.b16 %v156
    %v819 = vunpack.c.h.b16 %v156
    %v820 = vunpack.c.l.b16 %v157
    %v821 = vunpack.c.h.b16 %v157
    %v822 = vunpack.c.l.b16 %v158
    %v823 = vunpack.c.h.b16 %v158
    %v824 = vunpack.c.l.b16 %v159
    %v825 = vunpack.c.h.b16 %v159
    %v826 = vunpack.c.l.b16 %v160
    %v827 = vunpack.c.h.b16 %v160
    %v828 = vunpack.c.l.b16 %v161
    %v829 = vunpack.c.h.b16 %v161
    %v830 = vunpack.c.l.b16 %v162
    %v831 = vunpack.c.h.b16 %v162
    %v832 = vunpack.c.l.b16 %v163
    %v833 = vunpack.c.h.b16 %v163
    %v834 = vunpack.c.l.b16 %v164
    %v835 = vunpack.c.h.b16 %v164
    %v836 = vunpack.c.l.b16 %v165
    %v837 = vunpack.c.h.b16 %v165
    %v838 = vunpack.c.l.b16 %v166
    %v839 = vunpack.c.h.b16 %v166
    %v840 = vunpack.c.l.b16 %v167
    %v841 = vunpack.c.h.b16 %v167
    %v842 = vunpack.c.l.b16 %v168
    %v843 = vunpack.c.h.b16 %v168
    %v844 = vunpack.c.l.b16 %v169
    %v845 = vunpack.c.h.b16 %v169
    %v846 = vunpack.c.l.b16 %v170
    %v847 = vunpack.c.h.b16 %v170
    %v848 = vunpack.c.l.b16 %v171
    %v849 = vunpack.c.h.b16 %v171
    %v850 = vunpack.c.l.b16 %v172
    %v851 = vunpack.c.h.b16 %v172
    %v852 = vunpack.c.l.b16 %v173
    %v853 = vunpack.c.h.b16 %v173
    %v854 = vunpack.c.l.b16 %v174
    %v855 = vunpack.c.h.b16 %v174
    %v856 = vunpack.c.l.b16 %v175
    %v857 = vunpack.c.h.b16 %v175
    %v858 = vunpack.c.l.b16 %v176
    %v859 = vunpack.c.h.b16 %v176
    %v860 = vunpack.c.l.b16 %v177
    %v861 = vunpack.c.h.b16 %v177
    %v862 = vunpack.c.l.b16 %v178
    %v863 = vunpack.c.h.b16 %v178
    %v864 = vunpack.c.l.b16 %v179
    %v865 = vunpack.c.h.b16 %v179
    %v866 = vunpack.c.l.b16 %v180
    %v867 = vunpack.c.h.b16 %v180
    %v868 = vunpack.c.l.b16 %v181
    %v869 = vunpack.c.h.b16 %v181
    %v870 = vunpack.c.l.b16 %v182
    %v871 = vunpack.c.h.b16 %v182
    %v872 = vunpack.c.l.b16 %v183
    %v873 = vunpack.c.h.b16 %v183
    %v874 = vunpack.c.l.b16 %v184
    %v875 = vunpack.c.h.b16 %v184
    %v876 = vunpack.c.l.b16 %v185
    %v877 = vunpack.c.h.b16 %v185
    %v878 = vunpack.c.l.b16 %v186
    %v879 = vunpack.c.h.b16 %v186
    %v880 = vunpack.c.l.b16 %v187
    %v881 = vunpack.c.h.b16 %v187
    %v882 = vunpack.c.l.b16 %v188
    %v883 = vunpack.c.h.b16 %v188
    %v884 = vunpack.c.l.b16 %v189
    %v885 = vunpack.c.h.b16 %v189
    %v886 = vunpack.c.l.b16 %v190
    %v887 = vunpack.c.h.b16 %v190
    %v888 = vunpack.c.l.b16 %v191
    %v889 = vunpack.c.h.b16 %v191
    %v890 = vunpack.c.l.b16 %v192
    %v891 = vunpack.c.h.b16 %v192
    %v892 = vunpack.c.l.b16 %v193
    %v893 = vunpack.c.h.b16 %v193
    %v894 = vunpack.c.l.b16 %v194
    %v895 = vunpack.c.h.b16 %v194
    %v896 = vunpack.c.l.b16 %v195
    %v897 = vunpack.c.h.b16 %v195
    %v898 = vunpack.c.l.b16 %v196
    %v899 = vunpack.c.h.b16 %v196
    %v900 = vunpack.c.l.b16 %v197
    %v901 = vunpack.c.h.b16 %v197
    %v902 = vunpack.c.l.b16 %v198
    %v903 = vunpack.c.h.b16 %v198
    %v904 = vunpack.c.l.b16 %v199
    %v905 = vunpack.c.h.b16 %v199
    %v906 = vunpack.c.l.b16 %v200
    %v907 = vunpack.c.h.b16 %v200
    %v908 = vunpack.c.l.b16 %v201
    %v909 = vunpack.c.h.b16 %v201
    %v910 = vunpack.c.l.b16 %v202
    %v911 = vunpack.c.h.b16 %v202
    %v912 = vunpack.c.l.b16 %v203
    %v913 = vunpack.c.h.b16 %v203
    %v914 = vunpack.c.l.b16 %v204
    %v915 = vunpack.c.h.b16 %v204
    %v916 = vunpack.c.l.b16 %v205
    %v917 = vunpack.c.h.b16 %v205
    %v918 = vunpack.c.l.b16 %v206
    %v919 = vunpack.c.h.b16 %v206
    %v920 = vunpack.c.l.b16 %v207
    %v921 = vunpack.c.h.b16 %v207
    %v922 = vunpack.c.l.b16 %v208
    %v923 = vunpack.c.h.b16 %v208
    %v924 = vunpack.c.l.b16 %v209
    %v925 = vunpack.c.h.b16 %v209
    %v926 = vunpack.c.l.b16 %v210
    %v927 = vunpack.c.h.b16 %v210
    %v928 = vunpack.c.l.b16 %v211
    %v929 = vunpack.c.h.b16 %v211
    %v930 = vunpack.c.l.b16 %v212
    %v931 = vunpack.c.h.b16 %v212
    %v932 = vunpack.c.l.b16 %v213
    %v933 = vunpack.c.h.b16 %v213
    %v934 = vunpack.c.l.b16 %v214
    %v935 = vunpack.c.h.b16 %v214
    %v936 = vunpack.c.l.b16 %v215
    %v937 = vunpack.c.h.b16 %v215
    %v938 = vunpack.c.l.b16 %v216
    %v939 = vunpack.c.h.b16 %v216
    %v940 = vunpack.c.l.b16 %v217
    %v941 = vunpack.c.h.b16 %v217
    %v942 = vunpack.c.l.b16 %v218
    %v943 = vunpack.c.h.b16 %v218
    %v944 = vunpack.c.l.b16 %v219
    %v945 = vunpack.c.h.b16 %v219
    %v946 = vunpack.c.l.b16 %v220
    %v947 = vunpack.c.h.b16 %v220
    %v948 = vunpack.c.l.b16 %v221
    %v949 = vunpack.c.h.b16 %v221
    %v950 = vunpack.c.l.b16 %v222
    %v951 = vunpack.c.h.b16 %v222
    %v952 = vunpack.c.l.b16 %v223
    %v953 = vunpack.c.h.b16 %v223
    %v954 = vunpack.c.l.b16 %v224
    %v955 = vunpack.c.h.b16 %v224
    %v956 = vunpack.c.l.b16 %v225
    %v957 = vunpack.c.h.b16 %v225
    %v958 = vunpack.c.l.b16 %v226
    %v959 = vunpack.c.h.b16 %v226
    %v960 = vunpack.c.l.b16 %v227
    %v961 = vunpack.c.h.b16 %v227
    %v962 = vunpack.c.l.b16 %v228
    %v963 = vunpack.c.h.b16 %v228
    %v964 = vunpack.c.l.b16 %v229
    %v965 = vunpack.c.h.b16 %v229
    %v966 = vunpack.c.l.b16 %v230
    %v967 = vunpack.c.h.b16 %v230
    %v968 = vunpack.c.l.b16 %v231
    %v969 = vunpack.c.h.b16 %v231
    %v970 = vunpack.c.l.b16 %v232
    %v971 = vunpack.c.h.b16 %v232
    %v972 = vunpack.c.l.b16 %v233
    %v973 = vunpack.c.h.b16 %v233
    %v974 = vunpack.c.l.b16 %v234
    %v975 = vunpack.c.h.b16 %v234
    %v976 = vunpack.c.l.b16 %v235
    %v977 = vunpack.c.h.b16 %v235
    %v978 = vunpack.c.l.b16 %v236
    %v979 = vunpack.c.h.b16 %v236
    %v980 = vunpack.c.l.b16 %v237
    %v981 = vunpack.c.h.b16 %v237
    %v982 = vunpack.c.l.b16 %v238
    %v983 = vunpack.c.h.b16 %v238
    %v984 = vunpack.c.l.b16 %v239
    %v985 = vunpack.c.h.b16 %v239
    %v986 = vunpack.c.l.b16 %v240
    %v987 = vunpack.c.h.b16 %v240
    %v988 = vunpack.c.l.b16 %v241
    %v989 = vunpack.c.h.b16 %v241
    %v990 = vunpack.c.l.b16 %v242
    %v991 = vunpack.c.h.b16 %v242
    %v992 = vunpack.c.l.b16 %v243
    %v993 = vunpack.c.h.b16 %v243
    %v994 = vunpack.c.l.b16 %v244
    %v995 = vunpack.c.h.b16 %v244
    %v996 = vunpack.c.l.b16 %v245
    %v997 = vunpack.c.h.b16 %v245
    %v998 = vunpack.c.l.b16 %v246
    %v999 = vunpack.c.h.b16 %v246
    %v1000 = vunpack.c.l.b16 %v247
    %v1001 = vunpack.c.h.b16 %v247
    %v1002 = vunpack.c.l.b16 %v248
    %v1003 = vunpack.c.h.b16 %v248
    %v1004 = vunpack.c.l.b16 %v249
    %v1005 = vunpack.c.h.b16 %v249
    %v1006 = vunpack.c.l.b16 %v250
    %v1007 = vunpack.c.h.b16 %v250
    %v1008 = vunpack.c.l.b16 %v251
    %v1009 = vunpack.c.h.b16 %v251
    %v1010 = vunpack.c.l.b16 %v252
    %v1011 = vunpack.c.h.b16 %v252
    %v1012 = vunpack.c.l.b16 %v253
    %v1013 = vunpack.c.h.b16 %v253
    %v1014 = vunpack.c.l.b16 %v254
    %v1015 = vunpack.c.h.b16 %v254
    %v1016 = vunpack.c.l.b16 %v255
    %v1017 = vunpack.c.h.b16 %v255
    %v1018 = vunpack.c.l.b16 %v256
    %v1019 = vunpack.c.h.b16 %v256
    %v1020 = vunpack.c.l.b16 %v257
    %v1021 = vunpack.c.h.b16 %v257
    %v1022 = vunpack.c.l.b16 %v258
    %v1023 = vunpack.c.h.b16 %v258
    %v1024 = vunpack.c.l.b16 %v259
    %v1025 = vunpack.c.h.b16 %v259
    %v1026 = vunpack.c.l.b16 %v260
    %v1027 = vunpack.c.h.b16 %v260
    %v1028 = vunpack.c.l.b16 %v261
    %v1029 = vunpack.c.h.b16 %v261
    %v1030 = vunpack.c.l.b16 %v262
    %v1031 = vunpack.c.h.b16 %v262
    %v1032 = vunpack.c.l.b16 %v263
    %v1033 = vunpack.c.h.b16 %v263
    %v1034 = vunpack.c.l.b16 %v264
    %v1035 = vunpack.c.h.b16 %v264
    %v1036 = vunpack.c.l.b16 %v265
    %v1037 = vunpack.c.h.b16 %v265
    %v1038 = vunpack.c.l.b16 %v266
    %v1039 = vunpack.c.h.b16 %v266
    %v1040 = vunpack.c.l.b16 %v267
    %v1041 = vunpack.c.h.b16 %v267
    %v1042 = vunpack.c.l.b16 %v268
    %v1043 = vunpack.c.h.b16 %v268
    %v1044 = vunpack.c.l.b16 %v269
    %v1045 = vunpack.c.h.b16 %v269
    %v1046 = vunpack.c.l.b16 %v270
    %v1047 = vunpack.c.h.b16 %v270
    %v1048 = vunpack.c.l.b16 %v271
    %v1049 = vunpack.c.h.b16 %v271
    %v1050 = vunpack.c.l.b16 %v272
    %v1051 = vunpack.c.h.b16 %v272
    %v1052 = vunpack.c.l.b16 %v273
    %v1053 = vunpack.c.h.b16 %v273
    %v1054 = vunpack.c.l.b16 %v274
    %v1055 = vunpack.c.h.b16 %v274
    %v1056 = vunpack.c.l.b16 %v275
    %v1057 = vunpack.c.h.b16 %v275
    %v1058 = vunpack.c.l.b16 %v276
    %v1059 = vunpack.c.h.b16 %v276
    %v1060 = vunpack.c.l.b16 %v277
    %v1061 = vunpack.c.h.b16 %v277
    %v1062 = vunpack.c.l.b16 %v278
    %v1063 = vunpack.c.h.b16 %v278
    %v1064 = vunpack.c.l.b16 %v279
    %v1065 = vunpack.c.h.b16 %v279
    %v1066 = vunpack.c.l.b16 %v280
    %v1067 = vunpack.c.h.b16 %v280
    %v1068 = vunpack.c.l.b16 %v281
    %v1069 = vunpack.c.h.b16 %v281
    %v1070 = vunpack.c.l.b16 %v282
    %v1071 = vunpack.c.h.b16 %v282
    %v1072 = vunpack.c.l.b16 %v283
    %v1073 = vunpack.c.h.b16 %v283
    %v1074 = vunpack.c.l.b16 %v284
    %v1075 = vunpack.c.h.b16 %v284
    %v1076 = vunpack.c.l.b16 %v285
    %v1077 = vunpack.c.h.b16 %v285
    %v1078 = vunpack.c.l.b16 %v286
    %v1079 = vunpack.c.h.b16 %v286
    %v1080 = vunpack.c.l.b16 %v287
    %v1081 = vunpack.c.h.b16 %v287
    %v1082 = vunpack.c.l.b16 %v288
    %v1083 = vunpack.c.h.b16 %v288
    %v1084 = vunpack.c.l.b16 %v289
    %v1085 = vunpack.c.h.b16 %v289
    %v1086 = vunpack.c.l.b16 %v290
    %v1087 = vunpack.c.h.b16 %v290
    %v1088 = vunpack.c.l.b16 %v291
    %v1089 = vunpack.c.h.b16 %v291
    %v1090 = vunpack.c.l.b16 %v292
    %v1091 = vunpack.c.h.b16 %v292
    %v1092 = vunpack.c.l.b16 %v293
    %v1093 = vunpack.c.h.b16 %v293
    %v1094 = vunpack.c.l.b16 %v294
    %v1095 = vunpack.c.h.b16 %v294
    %v1096 = vunpack.c.l.b16 %v295
    %v1097 = vunpack.c.h.b16 %v295
    %v1098 = vunpack.c.l.b16 %v296
    %v1099 = vunpack.c.h.b16 %v296
    %v1100 = vunpack.c.l.b16 %v297
    %v1101 = vunpack.c.h.b16 %v297
    %v1102 = vunpack.c.l.b16 %v298
    %v1103 = vunpack.c.h.b16 %v298
    %v1104 = vunpack.c.l.b16 %v299
    %v1105 = vunpack.c.h.b16 %v299
    %v1106 = vunpack.c.l.b16 %v300
    %v1107 = vunpack.c.h.b16 %v300
    %v1108 = vunpack.c.l.b16 %v301
    %v1109 = vunpack.c.h.b16 %v301
    %v1110 = vunpack.c.l.b16 %v302
    %v1111 = vunpack.c.h.b16 %v302
    %v1112 = vunpack.c.l.b16 %v303
    %v1113 = vunpack.c.h.b16 %v303
    %v1114 = vpack.c.b16 %v606, %v602
    %v1115 = vpack.c.b16 %v607, %v603
    %v1116 = vpack.c.b16 %v608, %v604
    %v1117 = vpack.c.b16 %v609, %v605
    %v1118 = vpack.c.b16 %v614, %v610
    %v1119 = vpack.c.b16 %v615, %v611
    %v1120 = vpack.c.b16 %v616, %v612
    %v1121 = vpack.c.b16 %v617, %v613
    %v1122 = vpack.c.b16 %v622, %v618
    %v1123 = vpack.c.b16 %v623, %v619
    %v1124 = vpack.c.b16 %v624, %v620
    %v1125 = vpack.c.b16 %v625, %v621
    %v1126 = vpack.c.b16 %v630, %v626
    %v1127 = vpack.c.b16 %v631, %v627
    %v1128 = vpack.c.b16 %v632, %v628
    %v1129 = vpack.c.b16 %v633, %v629
    %v1130 = vpack.c.b16 %v638, %v634
    %v1131 = vpack.c.b16 %v639, %v635
    %v1132 = vpack.c.b16 %v640, %v636
    %v1133 = vpack.c.b16 %v641, %v637
    %v1134 = vpack.c.b16 %v646, %v642
    %v1135 = vpack.c.b16 %v647, %v643
    %v1136 = vpack.c.b16 %v648, %v644
    %v1137 = vpack.c.b16 %v649, %v645
    %v1138 = vpack.c.b16 %v654, %v650
    %v1139 = vpack.c.b16 %v655, %v651
    %v1140 = vpack.c.b16 %v656, %v652
    %v1141 = vpack.c.b16 %v657, %v653
    %v1142 = vpack.c.b16 %v662, %v658
    %v1143 = vpack.c.b16 %v663, %v659
    %v1144 = vpack.c.b16 %v664, %v660
    %v1145 = vpack.c.b16 %v665, %v661
    %v1146 = vpack.c.b16 %v670, %v666
    %v1147 = vpack.c.b16 %v671, %v667
    %v1148 = vpack.c.b16 %v672, %v668
    %v1149 = vpack.c.b16 %v673, %v669
    %v1150 = vpack.c.b16 %v678, %v674
    %v1151 = vpack.c.b16 %v679, %v675
    %v1152 = vpack.c.b16 %v680, %v676
    %v1153 = vpack.c.b16 %v681, %v677
    %v1154 = vpack.c.b16 %v686, %v682
    %v1155 = vpack.c.b16 %v687, %v683
    %v1156 = vpack.c.b16 %v688, %v684
    %v1157 = vpack.c.b16 %v689, %v685
    %v1158 = vpack.c.b16 %v694, %v690
    %v1159 = vpack.c.b16 %v695, %v691
    %v1160 = vpack.c.b16 %v696, %v692
    %v1161 = vpack.c.b16 %v697, %v693
    %v1162 = vpack.c.b16 %v702, %v698
    %v1163 = vpack.c.b16 %v703, %v699
    %v1164 = vpack.c.b16 %v704, %v700
    %v1165 = vpack.c.b16 %v705, %v701
    %v1166 = vpack.c.b16 %v710, %v706
    %v1167 = vpack.c.b16 %v711, %v707
    %v1168 = vpack.c.b16 %v712, %v708
    %v1169 = vpack.c.b16 %v713, %v709
    %v1170 = vpack.c.b16 %v718, %v714
    %v1171 = vpack.c.b16 %v719, %v715
    %v1172 = vpack.c.b16 %v720, %v716
    %v1173 = vpack.c.b16 %v721, %v717
    %v1174 = vpack.c.b16 %v726, %v722
    %v1175 = vpack.c.b16 %v727, %v723
    %v1176 = vpack.c.b16 %v728, %v724
    %v1177 = vpack.c.b16 %v729, %v725
    %v1178 = vpack.c.b16 %v734, %v730
    %v1179 = vpack.c.b16 %v735, %v731
    %v1180 = vpack.c.b16 %v736, %v732
    %v1181 = vpack.c.b16 %v737, %v733
    %v1182 = vpack.c.b16 %v742, %v738
    %v1183 = vpack.c.b16 %v743, %v739
    %v1184 = vpack.c.b16 %v744, %v740
    %v1185 = vpack.c.b16 %v745, %v741
    %v1186 = vpack.c.b16 %v750, %v746
    %v1187 = vpack.c.b16 %v751, %v747
    %v1188 = vpack.c.b16 %v752, %v748
    %v1189 = vpack.c.b16 %v753, %v749
    %v1190 = vpack.c.b16 %v758, %v754
    %v1191 = vpack.c.b16 %v759, %v755
    %v1192 = vpack.c.b16 %v760, %v756
    %v1193 = vpack.c.b16 %v761, %v757
    %v1194 = vpack.c.b16 %v766, %v762
    %v1195 = vpack.c.b16 %v767, %v763
    %v1196 = vpack.c.b16 %v768, %v764
    %v1197 = vpack.c.b16 %v769, %v765
    %v1198 = vpack.c.b16 %v774, %v770
    %v1199 = vpack.c.b16 %v775, %v771
    %v1200 = vpack.c.b16 %v776, %v772
    %v1201 = vpack.c.b16 %v777, %v773
    %v1202 = vpack.c.b16 %v782, %v778
    %v1203 = vpack.c.b16 %v783, %v779
    %v1204 = vpack.c.b16 %v784, %v780
    %v1205 = vpack.c.b16 %v785, %v781
    %v1206 = vpack.c.b16 %v790, %v786
    %v1207 = vpack.c.b16 %v791, %v787
    %v1208 = vpack.c.b16 %v792, %v788
    %v1209 = vpack.c.b16 %v793, %v789
    %v1210 = vpack.c.b16 %v798, %v794
    %v1211 = vpack.c.b16 %v799, %v795
    %v1212 = vpack.c.b16 %v800, %v796
    %v1213 = vpack.c.b16 %v801, %v797
    %v1214 = vpack.c.b16 %v806, %v802
    %v1215 = vpack.c.b16 %v807, %v803
    %v1216 = vpack.c.b16 %v808, %v804
    %v1217 = vpack.c.b16 %v809, %v805
    %v1218 = vpack.c.b16 %v814, %v810
    %v1219 = vpack.c.b16 %v815, %v811
    %v1220 = vpack.c.b16 %v816, %v812
    %v1221 = vpack.c.b16 %v817, %v813
    %v1222 = vpack.c.b16 %v822, %v818
    %v1223 = vpack.c.b16 %v823, %v819
    %v1224 = vpack.c.b16 %v824, %v820
    %v1225 = vpack.c.b16 %v825, %v821
    %v1226 = vpack.c.b16 %v830, %v826
    %v1227 = vpack.c.b16 %v831, %v827
    %v1228 = vpack.c.b16 %v832, %v828
    %v1229 = vpack.c.b16 %v833, %v829
    %v1230 = vpack.c.b16 %v838, %v834
    %v1231 = vpack.c.b16 %v839, %v835
    %v1232 = vpack.c.b16 %v840, %v836
    %v1233 = vpack.c.b16 %v841, %v837
    %v1234 = vpack.c.b16 %v846, %v842
    %v1235 = vpack.c.b16 %v847, %v843
    %v1236 = vpack.c.b16 %v848, %v844
    %v1237 = vpack.c.b16 %v849, %v845
    %v1238 = vpack.c.b16 %v854, %v850
    %v1239 = vpack.c.b16 %v855, %v851
    %v1240 = vpack.c.b16 %v856, %v852
    %v1241 = vpack.c.b16 %v857, %v853
    %v1242 = vpack.c.b16 %v862, %v858
    %v1243 = vpack.c.b16 %v863, %v859
    %v1244 = vpack.c.b16 %v864, %v860
    %v1245 = vpack.c.b16 %v865, %v861
    %v1246 = vpack.c.b16 %v870, %v866
    %v1247 = vpack.c.b16 %v871, %v867
    %v1248 = vpack.c.b16 %v872, %v868
    %v1249 = vpack.c.b16 %v873, %v869
    %v1250 = vpack.c.b16 %v878, %v874
    %v1251 = vpack.c.b16 %v879, %v875
    %v1252 = vpack.c.b16 %v880, %v876
    %v1253 = vpack.c.b16 %v881, %v877
    %v1254 = vpack.c.b16 %v886, %v882
    %v1255 = vpack.c.b16 %v887, %v883
    %v1256 = vpack.c.b16 %v888, %v884
    %v1257 = vpack.c.b16 %v889, %v885
    %v1258 = vpack.c.b16 %v894, %v890
    %v1259 = vpack.c.b16 %v895, %v891
    %v1260 = vpack.c.b16 %v896, %v892
    %v1261 = vpack.c.b16 %v897, %v893
    %v1262 = vpack.c.b16 %v902, %v898
    %v1263 = vpack.c.b16 %v903, %v899
    %v1264 = vpack.c.b16 %v904, %v900
    %v1265 = vpack.c.b16 %v905, %v901
    %v1266 = vpack.c.b16 %v910, %v906
    %v1267 = vpack.c.b16 %v911, %v907
    %v1268 = vpack.c.b16 %v912, %v908
    %v1269 = vpack.c.b16 %v913, %v909
    %v1270 = vpack.c.b16 %v918, %v914
    %v1271 = vpack.c.b16 %v919, %v915
    %v1272 = vpack.c.b16 %v920, %v916
    %v1273 = vpack.c.b16 %v921, %v917
    %v1274 = vpack.c.b16 %v926, %v922
    %v1275 = vpack.c.b16 %v927, %v923
    %v1276 = vpack.c.b16 %v928, %v924
    %v1277 = vpack.c.b16 %v929, %v925
    %v1278 = vpack.c.b16 %v934, %v930
    %v1279 = vpack.c.b16 %v935, %v931
    %v1280 = vpack.c.b16 %v936, %v932
    %v1281 = vpack.c.b16 %v937, %v933
    %v1282 = vpack.c.b16 %v942, %v938
    %v1283 = vpack.c.b16 %v943, %v939
    %v1284 = vpack.c.b16 %v944, %v940
    %v1285 = vpack.c.b16 %v945, %v941
    %v1286 = vpack.c.b16 %v950, %v946
    %v1287 = vpack.c.b16 %v951, %v947
    %v1288 = vpack.c.b16 %v952, %v948
    %v1289 = vpack.c.b16 %v953, %v949
    %v1290 = vpack.c.b16 %v958, %v954
    %v1291 = vpack.c.b16 %v959, %v955
    %v1292 = vpack.c.b16 %v960, %v956
    %v1293 = vpack.c.b16 %v961, %v957
    %v1294 = vpack.c.b16 %v966, %v962
    %v1295 = vpack.c.b16 %v967, %v963
    %v1296 = vpack.c.b16 %v968, %v964
    %v1297 = vpack.c.b16 %v969, %v965
    %v1298 = vpack.c.b16 %v974, %v970
    %v1299 = vpack.c.b16 %v975, %v971
    %v1300 = vpack.c.b16 %v976, %v972
    %v1301 = vpack.c.b16 %v977, %v973
    %v1302 = vpack.c.b16 %v982, %v978
    %v1303 = vpack.c.b16 %v983, %v979
    %v1304 = vpack.c.b16 %v984, %v980
    %v1305 = vpack.c.b16 %v985, %v981
    %v1306 = vpack.c.b16 %v990, %v986
    %v1307 = vpack.c.b16 %v991, %v987
    %v1308 = vpack.c.b16 %v992, %v988
    %v1309 = vpack.c.b16 %v993, %v989
    %v1310 = vpack.c.b16 %v998, %v994
    %v1311 = vpack.c.b16 %v999, %v995
    %v1312 = vpack.c.b16 %v1000, %v996
    %v1313 = vpack.c.b16 %v1001, %v997
    %v1314 = vpack.c.b16 %v1006, %v1002
    %v1315 = vpack.c.b16 %v1007, %v1003
    %v1316 = vpack.c.b16 %v1008, %v1004
    %v1317 = vpack.c.b16 %v1009, %v1005
    %v1318 = vpack.c.b16 %v1014, %v1010
    %v1319 = vpack.c.b16 %v1015, %v1011
    %v1320 = vpack.c.b16 %v1016, %v1012
    %v1321 = vpack.c.b16 %v1017, %v1013
    %v1322 = vpack.c.b16 %v1022, %v1018
    %v1323 = vpack.c.b16 %v1023, %v1019
    %v1324 = vpack.c.b16 %v1024, %v1020
    %v1325 = vpack.c.b16 %v1025, %v1021
    %v1326 = vpack.c.b16 %v1030, %v1026
    %v1327 = vpack.c.b16 %v1031, %v1027
    %v1328 = vpack.c.b16 %v1032, %v1028
    %v1329 = vpack.c.b16 %v1033, %v1029
    %v1330 = vpack.c.b16 %v1038, %v1034
    %v1331 = vpack.c.b16 %v1039, %v1035
    %v1332 = vpack.c.b16 %v1040, %v1036
    %v1333 = vpack.c.b16 %v1041, %v1037
    %v1334 = vpack.c.b16 %v1046, %v1042
    %v1335 = vpack.c.b16 %v1047, %v1043
    %v1336 = vpack.c.b16 %v1048, %v1044
    %v1337 = vpack.c.b16 %v1049, %v1045
    %v1338 = vpack.c.b16 %v1054, %v1050
    %v1339 = vpack.c.b16 %v1055, %v1051
    %v1340 = vpack.c.b16 %v1056, %v1052
    %v1341 = vpack.c.b16 %v1057, %v1053
    %v1342 = vpack.c.b16 %v1062, %v1058
    %v1343 = vpack.c.b16 %v1063, %v1059
    %v1344 = vpack.c.b16 %v1064, %v1060
    %v1345 = vpack.c.b16 %v1065, %v1061
    %v1346 = vpack.c.b16 %v1070, %v1066
    %v1347 = vpack.c.b16 %v1071, %v1067
    %v1348 = vpack.c.b16 %v1072, %v1068
    %v1349 = vpack.c.b16 %v1073, %v1069
    %v1350 = vpack.c.b16 %v1078, %v1074
    %v1351 = vpack.c.b16 %v1079, %v1075
    %v1352 = vpack.c.b16 %v1080, %v1076
    %v1353 = vpack.c.b16 %v1081, %v1077
    %v1354 = vpack.c.b16 %v1086, %v1082
    %v1355 = vpack.c.b16 %v1087, %v1083
    %v1356 = vpack.c.b16 %v1088, %v1084
    %v1357 = vpack.c.b16 %v1089, %v1085
    %v1358 = vpack.c.b16 %v1094, %v1090
    %v1359 = vpack.c.b16 %v1095, %v1091
    %v1360 = vpack.c.b16 %v1096, %v1092
    %v1361 = vpack.c.b16 %v1097, %v1093
    %v1362 = vpack.c.b16 %v1102, %v1098
    %v1363 = vpack.c.b16 %v1103, %v1099
    %v1364 = vpack.c.b16 %v1104, %v1100
    %v1365 = vpack.c.b16 %v1105, %v1101
    %v1366 = vpack.c.b16 %v1110, %v1106
    %v1367 = vpack.c.b16 %v1111, %v1107
    %v1368 = vpack.c.b16 %v1112, %v1108
    %v1369 = vpack.c.b16 %v1113, %v1109
    %1626 = vmatpush.bf16.msra.mxu0 %v1142
    %1627 = vmatpush.bf16.msra.mxu0 %v1138
    %1628 = vmatpush.bf16.msra.mxu0 %v1134
    %1629 = vmatpush.bf16.msra.mxu0 %v1130
    %1630 = vmatpush.bf16.msra.mxu0 %v1126
    %1631 = vmatpush.bf16.msra.mxu0 %v1122
    %1632 = vmatpush.bf16.msra.mxu0 %v1118
    %1633 = vmatpush.bf16.msra.mxu0 %v1114
    %1634 = vmatmul.bf16.gmra.mxu0 %v330
    %v1635 = vpop.f32.mrf.mxu0
    %v1636 = vadd.f32 %v314, %v1635
    %v1637 = vpop.f32.mrf.mxu0
    %1638 = vdwg.mxu0
    %1639 = vmatpush.bf16.msra.mxu0 %v1174
    %1640 = vmatpush.bf16.msra.mxu0 %v1170
    %1641 = vmatpush.bf16.msra.mxu0 %v1166
    %1642 = vmatpush.bf16.msra.mxu0 %v1162
    %1643 = vmatpush.bf16.msra.mxu0 %v1158
    %1644 = vmatpush.bf16.msra.mxu0 %v1154
    %1645 = vmatpush.bf16.msra.mxu0 %v1150
    %1646 = vmatpush.bf16.msra.mxu0 %v1146
    %1647 = vmatmul.bf16.gmra.mxu0 %v331
    %v1648 = vpop.f32.mrf.mxu0
    %v1649 = vadd.f32 %v1636, %v1648
    %v1650 = vpop.f32.mrf.mxu0
    %1651 = vdwg.mxu0
    %1652 = vmatpush.bf16.msra.mxu0 %v1206
    %1653 = vmatpush.bf16.msra.mxu0 %v1202
    %1654 = vmatpush.bf16.msra.mxu0 %v1198
    %1655 = vmatpush.bf16.msra.mxu0 %v1194
    %1656 = vmatpush.bf16.msra.mxu0 %v1190
    %1657 = vmatpush.bf16.msra.mxu0 %v1186
    %1658 = vmatpush.bf16.msra.mxu0 %v1182
    %1659 = vmatpush.bf16.msra.mxu0 %v1178
    %1660 = vmatmul.bf16.gmra.mxu0 %v332
    %v1661 = vpop.f32.mrf.mxu0
    %v1662 = vadd.f32 %v1649, %v1661
    %v1663 = vpop.f32.mrf.mxu0
    %1664 = vdwg.mxu0
    %1665 = vmatpush.bf16.msra.mxu0 %v1238
    %1666 = vmatpush.bf16.msra.mxu0 %v1234
    %1667 = vmatpush.bf16.msra.mxu0 %v1230
    %1668 = vmatpush.bf16.msra.mxu0 %v1226
    %1669 = vmatpush.bf16.msra.mxu0 %v1222
    %1670 = vmatpush.bf16.msra.mxu0 %v1218
    %1671 = vmatpush.bf16.msra.mxu0 %v1214
    %1672 = vmatpush.bf16.msra.mxu0 %v1210
    %1673 = vmatmul.bf16.gmra.mxu0 %v333
    %v1674 = vpop.f32.mrf.mxu0
    %v1675 = vadd.f32 %v1662, %v1674
    %v1676 = vpop.f32.mrf.mxu0
    %1677 = vdwg.mxu0
    %1678 = vmatpush.bf16.msra.mxu0 %v1270
    %1679 = vmatpush.bf16.msra.mxu0 %v1266
    %1680 = vmatpush.bf16.msra.mxu0 %v1262
    %1681 = vmatpush.bf16.msra.mxu0 %v1258
    %1682 = vmatpush.bf16.msra.mxu0 %v1254
    %1683 = vmatpush.bf16.msra.mxu0 %v1250
    %1684 = vmatpush.bf16.msra.mxu0 %v1246
    %1685 = vmatpush.bf16.msra.mxu0 %v1242
    %1686 = vmatmul.bf16.gmra.mxu0 %v334
    %v1687 = vpop.f32.mrf.mxu0
    %v1688 = vadd.f32 %v1675, %v1687
    %v1689 = vpop.f32.mrf.mxu0
    %1690 = vdwg.mxu0
    %1691 = vmatpush.bf16.msra.mxu0 %v1302
    %1692 = vmatpush.bf16.msra.mxu0 %v1298
    %1693 = vmatpush.bf16.msra.mxu0 %v1294
    %1694 = vmatpush.bf16.msra.mxu0 %v1290
    %1695 = vmatpush.bf16.msra.mxu0 %v1286
    %1696 = vmatpush.bf16.msra.mxu0 %v1282
    %1697 = vmatpush.bf16.msra.mxu0 %v1278
    %1698 = vmatpush.bf16.msra.mxu0 %v1274
    %1699 = vmatmul.bf16.gmra.mxu0 %v335
    %v1700 = vpop.f32.mrf.mxu0
    %v1701 = vadd.f32 %v1688, %v1700
    %v1702 = vpop.f32.mrf.mxu0
    %1703 = vdwg.mxu0
    %1704 = vmatpush.bf16.msra.mxu0 %v1334
    %1705 = vmatpush.bf16.msra.mxu0 %v1330
    %1706 = vmatpush.bf16.msra.mxu0 %v1326
    %1707 = vmatpush.bf16.msra.mxu0 %v1322
    %1708 = vmatpush.bf16.msra.mxu0 %v1318
    %1709 = vmatpush.bf16.msra.mxu0 %v1314
    %1710 = vmatpush.bf16.msra.mxu0 %v1310
    %1711 = vmatpush.bf16.msra.mxu0 %v1306
    %1712 = vmatmul.bf16.gmra.mxu0 %v336
    %v1713 = vpop.f32.mrf.mxu0
    %v1714 = vadd.f32 %v1701, %v1713
    %v1715 = vpop.f32.mrf.mxu0
    %1716 = vdwg.mxu0
    %1717 = vmatpush.bf16.msra.mxu0 %v1366
    %1718 = vmatpush.bf16.msra.mxu0 %v1362
    %1719 = vmatpush.bf16.msra.mxu0 %v1358
    %1720 = vmatpush.bf16.msra.mxu0 %v1354
    %1721 = vmatpush.bf16.msra.mxu0 %v1350
    %1722 = vmatpush.bf16.msra.mxu0 %v1346
    %1723 = vmatpush.bf16.msra.mxu0 %v1342
    %1724 = vmatpush.bf16.msra.mxu0 %v1338
    %1725 = vmatmul.bf16.gmra.mxu0 %v337
    %v1726 = vpop.f32.mrf.mxu0
    %v1727 = vadd.f32 %v1714, %v1726
    %v1728 = vpop.f32.mrf.mxu0
    %1729 = vdwg.mxu0
    %1730 = vmatpush.bf16.msra.mxu0 %v1143
    %1731 = vmatpush.bf16.msra.mxu0 %v1139
    %1732 = vmatpush.bf16.msra.mxu0 %v1135
    %1733 = vmatpush.bf16.msra.mxu0 %v1131
    %1734 = vmatpush.bf16.msra.mxu0 %v1127
    %1735 = vmatpush.bf16.msra.mxu0 %v1123
    %1736 = vmatpush.bf16.msra.mxu0 %v1119
    %1737 = vmatpush.bf16.msra.mxu0 %v1115
    %1738 = vmatmul.bf16.gmra.mxu0 %v330
    %v1739 = vpop.f32.mrf.mxu0
    %v1740 = vadd.f32 %v315, %v1739
    %v1741 = vpop.f32.mrf.mxu0
    %1742 = vdwg.mxu0
    %1743 = vmatpush.bf16.msra.mxu0 %v1175
    %1744 = vmatpush.bf16.msra.mxu0 %v1171
    %1745 = vmatpush.bf16.msra.mxu0 %v1167
    %1746 = vmatpush.bf16.msra.mxu0 %v1163
    %1747 = vmatpush.bf16.msra.mxu0 %v1159
    %1748 = vmatpush.bf16.msra.mxu0 %v1155
    %1749 = vmatpush.bf16.msra.mxu0 %v1151
    %1750 = vmatpush.bf16.msra.mxu0 %v1147
    %1751 = vmatmul.bf16.gmra.mxu0 %v331
    %v1752 = vpop.f32.mrf.mxu0
    %v1753 = vadd.f32 %v1740, %v1752
    %v1754 = vpop.f32.mrf.mxu0
    %1755 = vdwg.mxu0
    %1756 = vmatpush.bf16.msra.mxu0 %v1207
    %1757 = vmatpush.bf16.msra.mxu0 %v1203
    %1758 = vmatpush.bf16.msra.mxu0 %v1199
    %1759 = vmatpush.bf16.msra.mxu0 %v1195
    %1760 = vmatpush.bf16.msra.mxu0 %v1191
    %1761 = vmatpush.bf16.msra.mxu0 %v1187
    %1762 = vmatpush.bf16.msra.mxu0 %v1183
    %1763 = vmatpush.bf16.msra.mxu0 %v1179
    %1764 = vmatmul.bf16.gmra.mxu0 %v332
    %v1765 = vpop.f32.mrf.mxu0
    %v1766 = vadd.f32 %v1753, %v1765
    %v1767 = vpop.f32.mrf.mxu0
    %1768 = vdwg.mxu0
    %1769 = vmatpush.bf16.msra.mxu0 %v1239
    %1770 = vmatpush.bf16.msra.mxu0 %v1235
    %1771 = vmatpush.bf16.msra.mxu0 %v1231
    %1772 = vmatpush.bf16.msra.mxu0 %v1227
    %1773 = vmatpush.bf16.msra.mxu0 %v1223
    %1774 = vmatpush.bf16.msra.mxu0 %v1219
    %1775 = vmatpush.bf16.msra.mxu0 %v1215
    %1776 = vmatpush.bf16.msra.mxu0 %v1211
    %1777 = vmatmul.bf16.gmra.mxu0 %v333
    %v1778 = vpop.f32.mrf.mxu0
    %v1779 = vadd.f32 %v1766, %v1778
    %v1780 = vpop.f32.mrf.mxu0
    %1781 = vdwg.mxu0
    %1782 = vmatpush.bf16.msra.mxu0 %v1271
    %1783 = vmatpush.bf16.msra.mxu0 %v1267
    %1784 = vmatpush.bf16.msra.mxu0 %v1263
    %1785 = vmatpush.bf16.msra.mxu0 %v1259
    %1786 = vmatpush.bf16.msra.mxu0 %v1255
    %1787 = vmatpush.bf16.msra.mxu0 %v1251
    %1788 = vmatpush.bf16.msra.mxu0 %v1247
    %1789 = vmatpush.bf16.msra.mxu0 %v1243
    %1790 = vmatmul.bf16.gmra.mxu0 %v334
    %v1791 = vpop.f32.mrf.mxu0
    %v1792 = vadd.f32 %v1779, %v1791
    %v1793 = vpop.f32.mrf.mxu0
    %1794 = vdwg.mxu0
    %1795 = vmatpush.bf16.msra.mxu0 %v1303
    %1796 = vmatpush.bf16.msra.mxu0 %v1299
    %1797 = vmatpush.bf16.msra.mxu0 %v1295
    %1798 = vmatpush.bf16.msra.mxu0 %v1291
    %1799 = vmatpush.bf16.msra.mxu0 %v1287
    %1800 = vmatpush.bf16.msra.mxu0 %v1283
    %1801 = vmatpush.bf16.msra.mxu0 %v1279
    %1802 = vmatpush.bf16.msra.mxu0 %v1275
    %1803 = vmatmul.bf16.gmra.mxu0 %v335
    %v1804 = vpop.f32.mrf.mxu0
    %v1805 = vadd.f32 %v1792, %v1804
    %v1806 = vpop.f32.mrf.mxu0
    %1807 = vdwg.mxu0
    %1808 = vmatpush.bf16.msra.mxu0 %v1335
    %1809 = vmatpush.bf16.msra.mxu0 %v1331
    %1810 = vmatpush.bf16.msra.mxu0 %v1327
    %1811 = vmatpush.bf16.msra.mxu0 %v1323
    %1812 = vmatpush.bf16.msra.mxu0 %v1319
    %1813 = vmatpush.bf16.msra.mxu0 %v1315
    %1814 = vmatpush.bf16.msra.mxu0 %v1311
    %1815 = vmatpush.bf16.msra.mxu0 %v1307
    %1816 = vmatmul.bf16.gmra.mxu0 %v336
    %v1817 = vpop.f32.mrf.mxu0
    %v1818 = vadd.f32 %v1805, %v1817
    %v1819 = vpop.f32.mrf.mxu0
    %1820 = vdwg.mxu0
    %1821 = vmatpush.bf16.msra.mxu0 %v1367
    %1822 = vmatpush.bf16.msra.mxu0 %v1363
    %1823 = vmatpush.bf16.msra.mxu0 %v1359
    %1824 = vmatpush.bf16.msra.mxu0 %v1355
    %1825 = vmatpush.bf16.msra.mxu0 %v1351
    %1826 = vmatpush.bf16.msra.mxu0 %v1347
    %1827 = vmatpush.bf16.msra.mxu0 %v1343
    %1828 = vmatpush.bf16.msra.mxu0 %v1339
    %1829 = vmatmul.bf16.gmra.mxu0 %v337
    %v1830 = vpop.f32.mrf.mxu0
    %v1831 = vadd.f32 %v1818, %v1830
    %v1832 = vpop.f32.mrf.mxu0
    %1833 = vdwg.mxu0
    %1834 = vmatpush.bf16.msra.mxu0 %v1144
    %1835 = vmatpush.bf16.msra.mxu0 %v1140
    %1836 = vmatpush.bf16.msra.mxu0 %v1136
    %1837 = vmatpush.bf16.msra.mxu0 %v1132
    %1838 = vmatpush.bf16.msra.mxu0 %v1128
    %1839 = vmatpush.bf16.msra.mxu0 %v1124
    %1840 = vmatpush.bf16.msra.mxu0 %v1120
    %1841 = vmatpush.bf16.msra.mxu0 %v1116
    %1842 = vmatmul.bf16.gmra.mxu0 %v330
    %v1843 = vpop.f32.mrf.mxu0
    %v1844 = vadd.f32 %v316, %v1843
    %v1845 = vpop.f32.mrf.mxu0
    %1846 = vdwg.mxu0
    %1847 = vmatpush.bf16.msra.mxu0 %v1176
    %1848 = vmatpush.bf16.msra.mxu0 %v1172
    %1849 = vmatpush.bf16.msra.mxu0 %v1168
    %1850 = vmatpush.bf16.msra.mxu0 %v1164
    %1851 = vmatpush.bf16.msra.mxu0 %v1160
    %1852 = vmatpush.bf16.msra.mxu0 %v1156
    %1853 = vmatpush.bf16.msra.mxu0 %v1152
    %1854 = vmatpush.bf16.msra.mxu0 %v1148
    %1855 = vmatmul.bf16.gmra.mxu0 %v331
    %v1856 = vpop.f32.mrf.mxu0
    %v1857 = vadd.f32 %v1844, %v1856
    %v1858 = vpop.f32.mrf.mxu0
    %1859 = vdwg.mxu0
    %1860 = vmatpush.bf16.msra.mxu0 %v1208
    %1861 = vmatpush.bf16.msra.mxu0 %v1204
    %1862 = vmatpush.bf16.msra.mxu0 %v1200
    %1863 = vmatpush.bf16.msra.mxu0 %v1196
    %1864 = vmatpush.bf16.msra.mxu0 %v1192
    %1865 = vmatpush.bf16.msra.mxu0 %v1188
    %1866 = vmatpush.bf16.msra.mxu0 %v1184
    %1867 = vmatpush.bf16.msra.mxu0 %v1180
    %1868 = vmatmul.bf16.gmra.mxu0 %v332
    %v1869 = vpop.f32.mrf.mxu0
    %v1870 = vadd.f32 %v1857, %v1869
    %v1871 = vpop.f32.mrf.mxu0
    %1872 = vdwg.mxu0
    %1873 = vmatpush.bf16.msra.mxu0 %v1240
    %1874 = vmatpush.bf16.msra.mxu0 %v1236
    %1875 = vmatpush.bf16.msra.mxu0 %v1232
    %1876 = vmatpush.bf16.msra.mxu0 %v1228
    %1877 = vmatpush.bf16.msra.mxu0 %v1224
    %1878 = vmatpush.bf16.msra.mxu0 %v1220
    %1879 = vmatpush.bf16.msra.mxu0 %v1216
    %1880 = vmatpush.bf16.msra.mxu0 %v1212
    %1881 = vmatmul.bf16.gmra.mxu0 %v333
    %v1882 = vpop.f32.mrf.mxu0
    %v1883 = vadd.f32 %v1870, %v1882
    %v1884 = vpop.f32.mrf.mxu0
    %1885 = vdwg.mxu0
    %1886 = vmatpush.bf16.msra.mxu0 %v1272
    %1887 = vmatpush.bf16.msra.mxu0 %v1268
    %1888 = vmatpush.bf16.msra.mxu0 %v1264
    %1889 = vmatpush.bf16.msra.mxu0 %v1260
    %1890 = vmatpush.bf16.msra.mxu0 %v1256
    %1891 = vmatpush.bf16.msra.mxu0 %v1252
    %1892 = vmatpush.bf16.msra.mxu0 %v1248
    %1893 = vmatpush.bf16.msra.mxu0 %v1244
    %1894 = vmatmul.bf16.gmra.mxu0 %v334
    %v1895 = vpop.f32.mrf.mxu0
    %v1896 = vadd.f32 %v1883, %v1895
    %v1897 = vpop.f32.mrf.mxu0
    %1898 = vdwg.mxu0
    %1899 = vmatpush.bf16.msra.mxu0 %v1304
    %1900 = vmatpush.bf16.msra.mxu0 %v1300
    %1901 = vmatpush.bf16.msra.mxu0 %v1296
    %1902 = vmatpush.bf16.msra.mxu0 %v1292
    %1903 = vmatpush.bf16.msra.mxu0 %v1288
    %1904 = vmatpush.bf16.msra.mxu0 %v1284
    %1905 = vmatpush.bf16.msra.mxu0 %v1280
    %1906 = vmatpush.bf16.msra.mxu0 %v1276
    %1907 = vmatmul.bf16.gmra.mxu0 %v335
    %v1908 = vpop.f32.mrf.mxu0
    %v1909 = vadd.f32 %v1896, %v1908
    %v1910 = vpop.f32.mrf.mxu0
    %1911 = vdwg.mxu0
    %1912 = vmatpush.bf16.msra.mxu0 %v1336
    %1913 = vmatpush.bf16.msra.mxu0 %v1332
    %1914 = vmatpush.bf16.msra.mxu0 %v1328
    %1915 = vmatpush.bf16.msra.mxu0 %v1324
    %1916 = vmatpush.bf16.msra.mxu0 %v1320
    %1917 = vmatpush.bf16.msra.mxu0 %v1316
    %1918 = vmatpush.bf16.msra.mxu0 %v1312
    %1919 = vmatpush.bf16.msra.mxu0 %v1308
    %1920 = vmatmul.bf16.gmra.mxu0 %v336
    %v1921 = vpop.f32.mrf.mxu0
    %v1922 = vadd.f32 %v1909, %v1921
    %v1923 = vpop.f32.mrf.mxu0
    %1924 = vdwg.mxu0
    %1925 = vmatpush.bf16.msra.mxu0 %v1368
    %1926 = vmatpush.bf16.msra.mxu0 %v1364
    %1927 = vmatpush.bf16.msra.mxu0 %v1360
    %1928 = vmatpush.bf16.msra.mxu0 %v1356
    %1929 = vmatpush.bf16.msra.mxu0 %v1352
    %1930 = vmatpush.bf16.msra.mxu0 %v1348
    %1931 = vmatpush.bf16.msra.mxu0 %v1344
    %1932 = vmatpush.bf16.msra.mxu0 %v1340
    %1933 = vmatmul.bf16.gmra.mxu0 %v337
    %v1934 = vpop.f32.mrf.mxu0
    %v1935 = vadd.f32 %v1922, %v1934
    %v1936 = vpop.f32.mrf.mxu0
    %1937 = vdwg.mxu0
    %1938 = vmatpush.bf16.msra.mxu0 %v1145
    %1939 = vmatpush.bf16.msra.mxu0 %v1141
    %1940 = vmatpush.bf16.msra.mxu0 %v1137
    %1941 = vmatpush.bf16.msra.mxu0 %v1133
    %1942 = vmatpush.bf16.msra.mxu0 %v1129
    %1943 = vmatpush.bf16.msra.mxu0 %v1125
    %1944 = vmatpush.bf16.msra.mxu0 %v1121
    %1945 = vmatpush.bf16.msra.mxu0 %v1117
    %1946 = vmatmul.bf16.gmra.mxu0 %v330
    %v1947 = vpop.f32.mrf.mxu0
    %v1948 = vadd.f32 %v317, %v1947
    %v1949 = vpop.f32.mrf.mxu0
    %1950 = vdwg.mxu0
    %1951 = vmatpush.bf16.msra.mxu0 %v1177
    %1952 = vmatpush.bf16.msra.mxu0 %v1173
    %1953 = vmatpush.bf16.msra.mxu0 %v1169
    %1954 = vmatpush.bf16.msra.mxu0 %v1165
    %1955 = vmatpush.bf16.msra.mxu0 %v1161
    %1956 = vmatpush.bf16.msra.mxu0 %v1157
    %1957 = vmatpush.bf16.msra.mxu0 %v1153
    %1958 = vmatpush.bf16.msra.mxu0 %v1149
    %1959 = vmatmul.bf16.gmra.mxu0 %v331
    %v1960 = vpop.f32.mrf.mxu0
    %v1961 = vadd.f32 %v1948, %v1960
    %v1962 = vpop.f32.mrf.mxu0
    %1963 = vdwg.mxu0
    %1964 = vmatpush.bf16.msra.mxu0 %v1209
    %1965 = vmatpush.bf16.msra.mxu0 %v1205
    %1966 = vmatpush.bf16.msra.mxu0 %v1201
    %1967 = vmatpush.bf16.msra.mxu0 %v1197
    %1968 = vmatpush.bf16.msra.mxu0 %v1193
    %1969 = vmatpush.bf16.msra.mxu0 %v1189
    %1970 = vmatpush.bf16.msra.mxu0 %v1185
    %1971 = vmatpush.bf16.msra.mxu0 %v1181
    %1972 = vmatmul.bf16.gmra.mxu0 %v332
    %v1973 = vpop.f32.mrf.mxu0
    %v1974 = vadd.f32 %v1961, %v1973
    %v1975 = vpop.f32.mrf.mxu0
    %1976 = vdwg.mxu0
    %1977 = vmatpush.bf16.msra.mxu0 %v1241
    %1978 = vmatpush.bf16.msra.mxu0 %v1237
    %1979 = vmatpush.bf16.msra.mxu0 %v1233
    %1980 = vmatpush.bf16.msra.mxu0 %v1229
    %1981 = vmatpush.bf16.msra.mxu0 %v1225
    %1982 = vmatpush.bf16.msra.mxu0 %v1221
    %1983 = vmatpush.bf16.msra.mxu0 %v1217
    %1984 = vmatpush.bf16.msra.mxu0 %v1213
    %1985 = vmatmul.bf16.gmra.mxu0 %v333
    %v1986 = vpop.f32.mrf.mxu0
    %v1987 = vadd.f32 %v1974, %v1986
    %v1988 = vpop.f32.mrf.mxu0
    %1989 = vdwg.mxu0
    %1990 = vmatpush.bf16.msra.mxu0 %v1273
    %1991 = vmatpush.bf16.msra.mxu0 %v1269
    %1992 = vmatpush.bf16.msra.mxu0 %v1265
    %1993 = vmatpush.bf16.msra.mxu0 %v1261
    %1994 = vmatpush.bf16.msra.mxu0 %v1257
    %1995 = vmatpush.bf16.msra.mxu0 %v1253
    %1996 = vmatpush.bf16.msra.mxu0 %v1249
    %1997 = vmatpush.bf16.msra.mxu0 %v1245
    %1998 = vmatmul.bf16.gmra.mxu0 %v334
    %v1999 = vpop.f32.mrf.mxu0
    %v2000 = vadd.f32 %v1987, %v1999
    %v2001 = vpop.f32.mrf.mxu0
    %2002 = vdwg.mxu0
    %2003 = vmatpush.bf16.msra.mxu0 %v1305
    %2004 = vmatpush.bf16.msra.mxu0 %v1301
    %2005 = vmatpush.bf16.msra.mxu0 %v1297
    %2006 = vmatpush.bf16.msra.mxu0 %v1293
    %2007 = vmatpush.bf16.msra.mxu0 %v1289
    %2008 = vmatpush.bf16.msra.mxu0 %v1285
    %2009 = vmatpush.bf16.msra.mxu0 %v1281
    %2010 = vmatpush.bf16.msra.mxu0 %v1277
    %2011 = vmatmul.bf16.gmra.mxu0 %v335
    %v2012 = vpop.f32.mrf.mxu0
    %v2013 = vadd.f32 %v2000, %v2012
    %v2014 = vpop.f32.mrf.mxu0
    %2015 = vdwg.mxu0
    %2016 = vmatpush.bf16.msra.mxu0 %v1337
    %2017 = vmatpush.bf16.msra.mxu0 %v1333
    %2018 = vmatpush.bf16.msra.mxu0 %v1329
    %2019 = vmatpush.bf16.msra.mxu0 %v1325
    %2020 = vmatpush.bf16.msra.mxu0 %v1321
    %2021 = vmatpush.bf16.msra.mxu0 %v1317
    %2022 = vmatpush.bf16.msra.mxu0 %v1313
    %2023 = vmatpush.bf16.msra.mxu0 %v1309
    %2024 = vmatmul.bf16.gmra.mxu0 %v336
    %v2025 = vpop.f32.mrf.mxu0
    %v2026 = vadd.f32 %v2013, %v2025
    %v2027 = vpop.f32.mrf.mxu0
    %2028 = vdwg.mxu0
    %2029 = vmatpush.bf16.msra.mxu0 %v1369
    %2030 = vmatpush.bf16.msra.mxu0 %v1365
    %2031 = vmatpush.bf16.msra.mxu0 %v1361
    %2032 = vmatpush.bf16.msra.mxu0 %v1357
    %2033 = vmatpush.bf16.msra.mxu0 %v1353
    %2034 = vmatpush.bf16.msra.mxu0 %v1349
    %2035 = vmatpush.bf16.msra.mxu0 %v1345
    %2036 = vmatpush.bf16.msra.mxu0 %v1341
    %2037 = vmatmul.bf16.gmra.mxu0 %v337
    %v2038 = vpop.f32.mrf.mxu0
    %v2039 = vadd.f32 %v2026, %v2038
    %v2040 = vpop.f32.mrf.mxu0
    %2041 = vdwg.mxu0
    %v2042 = vmax.f32 %v1727, 0.0
    %v2043 = vmax.f32 %v1831, 0.0
    %v2044 = vmax.f32 %v1935, 0.0
    %v2045 = vmax.f32 %v2039, 0.0
    %v2046 = vrot.slane %v2042, 4
    %v2047 = vadd.f32 %v2042, %v2046
    %v2048 = vrot.slane %v2047, 2
    %v2049 = vadd.f32 %v2047, %v2048
    %v2050 = vrot.slane %v2049, 1
    %v2051 = vadd.f32 %v2049, %v2050
    %v2052 = vrot.slane %v2043, 4
    %v2053 = vadd.f32 %v2043, %v2052
    %v2054 = vrot.slane %v2053, 2
    %v2055 = vadd.f32 %v2053, %v2054
    %v2056 = vrot.slane %v2055, 1
    %v2057 = vadd.f32 %v2055, %v2056
    %v2058 = vrot.slane %v2044, 4
    %v2059 = vadd.f32 %v2044, %v2058
    %v2060 = vrot.slane %v2059, 2
    %v2061 = vadd.f32 %v2059, %v2060
    %v2062 = vrot.slane %v2061, 1
    %v2063 = vadd.f32 %v2061, %v2062
    %v2064 = vrot.slane %v2045, 4
    %v2065 = vadd.f32 %v2045, %v2064
    %v2066 = vrot.slane %v2065, 2
    %v2067 = vadd.f32 %v2065, %v2066
    %v2068 = vrot.slane %v2067, 1
    %v2069 = vadd.f32 %v2067, %v2068
    %v2070 = vrcp.pop 8.0
    %v2071 = vmul.f32 8.0, %v2070
    %v2072 = vsub.f32 1.0, %v2071
    %v2073 = vmul.f32 %v2070, %v2072
    %v2074 = vadd.f32 %v2070, %v2073
    %vm2075 = vweird.f32 %v2070
    %v2076 = vsel %vm2075, %v2070, %v2074
    %v2077 = vmul.f32 %v2051, %v2076
    %v2078 = vmul.f32 %v2057, %v2076
    %v2079 = vmul.f32 %v2063, %v2076
    %v2080 = vmul.f32 %v2069, %v2076
    %v2081 = vsub.f32 %v2042, %v2077
    %v2082 = vsub.f32 %v2043, %v2078
    %v2083 = vsub.f32 %v2044, %v2079
    %v2084 = vsub.f32 %v2045, %v2080
    %v2085 = vmul.f32 %v2081, %v2081
    %v2086 = vmul.f32 %v2082, %v2082
    %v2087 = vmul.f32 %v2083, %v2083
    %v2088 = vmul.f32 %v2084, %v2084
    %v2089 = vrot.slane %v2085, 4
    %v2090 = vadd.f32 %v2085, %v2089
    %v2091 = vrot.slane %v2090, 2
    %v2092 = vadd.f32 %v2090, %v2091
    %v2093 = vrot.slane %v2092, 1
    %v2094 = vadd.f32 %v2092, %v2093
    %v2095 = vrot.slane %v2086, 4
    %v2096 = vadd.f32 %v2086, %v2095
    %v2097 = vrot.slane %v2096, 2
    %v2098 = vadd.f32 %v2096, %v2097
    %v2099 = vrot.slane %v2098, 1
    %v2100 = vadd.f32 %v2098, %v2099
    %v2101 = vrot.slane %v2087, 4
    %v2102 = vadd.f32 %v2087, %v2101
    %v2103 = vrot.slane %v2102, 2
    %v2104 = vadd.f32 %v2102, %v2103
    %v2105 = vrot.slane %v2104, 1
    %v2106 = vadd.f32 %v2104, %v2105
    %v2107 = vrot.slane %v2088, 4
    %v2108 = vadd.f32 %v2088, %v2107
    %v2109 = vrot.slane %v2108, 2
    %v2110 = vadd.f32 %v2108, %v2109
    %v2111 = vrot.slane %v2110, 1
    %v2112 = vadd.f32 %v2110, %v2111
    %v2113 = vmul.f32 %v2094, %v2076
    %v2114 = vmul.f32 %v2100, %v2076
    %v2115 = vmul.f32 %v2106, %v2076
    %v2116 = vmul.f32 %v2112, %v2076
    %v2117 = vadd.f32 %v2113, 1e-05
    %v2118 = vadd.f32 %v2114, 1e-05
    %v2119 = vadd.f32 %v2115, 1e-05
    %v2120 = vadd.f32 %v2116, 1e-05
    %v2121 = vrsqrt.pop %v2117
    %v2122 = vmul.f32 %v2121, %v2117
    %v2123 = vmul.f32 %v2122, %v2121
    %v2124 = vmul.f32 0.5, %v2123
    %v2125 = vsub.f32 1.5, %v2124
    %v2126 = vmul.f32 %v2121, %v2125
    %vm2127 = vweird.f32 %v2117
    %vm2128 = vweird.f32 %v2121
    %vm2129 = vmor %vm2127, %vm2128
    %v2130 = vsel %vm2129, %v2121, %v2126
    %v2131 = vrsqrt.pop %v2118
    %v2132 = vmul.f32 %v2131, %v2118
    %v2133 = vmul.f32 %v2132, %v2131
    %v2134 = vmul.f32 0.5, %v2133
    %v2135 = vsub.f32 1.5, %v2134
    %v2136 = vmul.f32 %v2131, %v2135
    %vm2137 = vweird.f32 %v2118
    %vm2138 = vweird.f32 %v2131
    %vm2139 = vmor %vm2137, %vm2138
    %v2140 = vsel %vm2139, %v2131, %v2136
    %v2141 = vrsqrt.pop %v2119
    %v2142 = vmul.f32 %v2141, %v2119
    %v2143 = vmul.f32 %v2142, %v2141
    %v2144 = vmul.f32 0.5, %v2143
    %v2145 = vsub.f32 1.5, %v2144
    %v2146 = vmul.f32 %v2141, %v2145
    %vm2147 = vweird.f32 %v2119
    %vm2148 = vweird.f32 %v2141
    %vm2149 = vmor %vm2147, %vm2148
    %v2150 = vsel %vm2149, %v2141, %v2146
    %v2151 = vrsqrt.pop %v2120
    %v2152 = vmul.f32 %v2151, %v2120
    %v2153 = vmul.f32 %v2152, %v2151
    %v2154 = vmul.f32 0.5, %v2153
    %v2155 = vsub.f32 1.5, %v2154
    %v2156 = vmul.f32 %v2151, %v2155
    %vm2157 = vweird.f32 %v2120
    %vm2158 = vweird.f32 %v2151
    %vm2159 = vmor %vm2157, %vm2158
    %v2160 = vsel %vm2159, %v2151, %v2156
    %v2165 = vrot.slane %v2140, 4
    %v2166 = vrot.slane %v2160, 4
    %vm2167 = vcmask 1043456
    %v2168 = vsel %vm2167, %v2130, %v2165
    %v2169 = vsel %vm2167, %v2150, %v2166
    %v2170 = vrot.slane %v2168, 7
    %v2171 = vrot.slane %v2169, 7
    %v2174 = vmul.f32 %v40, %v2170
    %v2175 = vmul.f32 %v41, %v2171
    %v2178 = vperm.slane %v2174, 1
    %v2179 = vperm.slane %v2174, 5
    %v2180 = vperm.slane %v2175, 1
    %v2181 = vperm.slane %v2175, 5
    %v2186 = vperm.slane %v2178, 1
    %v2187 = vperm.slane %v2179, 1
    %v2188 = vperm.slane %v2180, 1
    %v2189 = vperm.slane %v2181, 1
    %v2190 = vmul.f32 %v2081, %v2186
    %v2191 = vmul.f32 %v2082, %v2187
    %v2192 = vmul.f32 %v2083, %v2188
    %v2193 = vmul.f32 %v2084, %v2189
    %v2194 = vperm.slane %v40, 2
    %v2195 = vperm.slane %v40, 6
    %v2196 = vperm.slane %v41, 2
    %v2197 = vperm.slane %v41, 6
    %v2202 = vperm.slane %v2194, 2
    %v2203 = vperm.slane %v2195, 2
    %v2204 = vperm.slane %v2196, 2
    %v2205 = vperm.slane %v2197, 2
    %v2206 = vadd.f32 %v2190, %v2202
    %v2207 = vadd.f32 %v2191, %v2203
    %v2208 = vadd.f32 %v2192, %v2204
    %v2209 = vadd.f32 %v2193, %v2205
    %v2210 = vpack.c.bf16 %v2206, %v2206
    %v2211 = vpack.c.bf16 %v2207, %v2207
    %v2212 = vpack.c.bf16 %v2208, %v2208
    %v2213 = vpack.c.bf16 %v2209, %v2209
    %v2214 = vld [vmem:[%s2] sm:$0xff]
    %v2215 = vld [vmem:[%s2 + $0x8] sm:$0xff]
    %v2216 = vld [vmem:[%s2 + $0x10] sm:$0xff]
    %v2217 = vld [vmem:[%s2 + $0x18] sm:$0xff]
    %v2218 = vld [vmem:[%s2 + $0x20] sm:$0xff]
    %v2219 = vld [vmem:[%s2 + $0x28] sm:$0xff]
    %v2220 = vld [vmem:[%s2 + $0x30] sm:$0xff]
    %v2221 = vld [vmem:[%s2 + $0x38] sm:$0xff]
    %v2222 = vld [vmem:[%s2 + $0x40] sm:$0xff]
    %v2223 = vld [vmem:[%s2 + $0x48] sm:$0xff]
    %v2224 = vld [vmem:[%s2 + $0x50] sm:$0xff]
    %v2225 = vld [vmem:[%s2 + $0x58] sm:$0xff]
    %v2226 = vld [vmem:[%s2 + $0x60] sm:$0xff]
    %v2227 = vld [vmem:[%s2 + $0x68] sm:$0xff]
    %v2228 = vld [vmem:[%s2 + $0x70] sm:$0xff]
    %v2229 = vld [vmem:[%s2 + $0x78] sm:$0xff]
    %v2230 = vld [vmem:[%s2 + $0x80] sm:$0xff]
    %v2231 = vld [vmem:[%s2 + $0x88] sm:$0xff]
    %v2232 = vld [vmem:[%s2 + $0x90] sm:$0xff]
    %v2233 = vld [vmem:[%s2 + $0x98] sm:$0xff]
    %v2234 = vld [vmem:[%s2 + $0xa0] sm:$0xff]
    %v2235 = vld [vmem:[%s2 + $0xa8] sm:$0xff]
    %v2236 = vld [vmem:[%s2 + $0xb0] sm:$0xff]
    %v2237 = vld [vmem:[%s2 + $0xb8] sm:$0xff]
    %v2238 = vld [vmem:[%s2 + $0xc0] sm:$0xff]
    %v2239 = vld [vmem:[%s2 + $0xc8] sm:$0xff]
    %v2240 = vld [vmem:[%s2 + $0xd0] sm:$0xff]
    %v2241 = vld [vmem:[%s2 + $0xd8] sm:$0xff]
    %v2242 = vld [vmem:[%s2 + $0xe0] sm:$0xff]
    %v2243 = vld [vmem:[%s2 + $0xe8] sm:$0xff]
    %v2244 = vld [vmem:[%s2 + $0xf0] sm:$0xff]
    %v2245 = vld [vmem:[%s2 + $0xf8] sm:$0xff]
    %v2246 = vld [vmem:[%s2 + $0x100] sm:$0xff]
    %v2247 = vld [vmem:[%s2 + $0x108] sm:$0xff]
    %v2248 = vld [vmem:[%s2 + $0x110] sm:$0xff]
    %v2249 = vld [vmem:[%s2 + $0x118] sm:$0xff]
    %v2250 = vld [vmem:[%s2 + $0x120] sm:$0xff]
    %v2251 = vld [vmem:[%s2 + $0x128] sm:$0xff]
    %v2252 = vld [vmem:[%s2 + $0x130] sm:$0xff]
    %v2253 = vld [vmem:[%s2 + $0x138] sm:$0xff]
    %v2254 = vld [vmem:[%s2 + $0x140] sm:$0xff]
    %v2255 = vld [vmem:[%s2 + $0x148] sm:$0xff]
    %v2256 = vld [vmem:[%s2 + $0x150] sm:$0xff]
    %v2257 = vld [vmem:[%s2 + $0x158] sm:$0xff]
    %v2258 = vld [vmem:[%s2 + $0x160] sm:$0xff]
    %v2259 = vld [vmem:[%s2 + $0x168] sm:$0xff]
    %v2260 = vld [vmem:[%s2 + $0x170] sm:$0xff]
    %v2261 = vld [vmem:[%s2 + $0x178] sm:$0xff]
    %v2262 = vld [vmem:[%s2 + $0x180] sm:$0xff]
    %v2263 = vld [vmem:[%s2 + $0x188] sm:$0xff]
    %v2264 = vld [vmem:[%s2 + $0x190] sm:$0xff]
    %v2265 = vld [vmem:[%s2 + $0x198] sm:$0xff]
    %v2266 = vld [vmem:[%s2 + $0x1a0] sm:$0xff]
    %v2267 = vld [vmem:[%s2 + $0x1a8] sm:$0xff]
    %v2268 = vld [vmem:[%s2 + $0x1b0] sm:$0xff]
    %v2269 = vld [vmem:[%s2 + $0x1b8] sm:$0xff]
    %v2270 = vld [vmem:[%s2 + $0x1c0] sm:$0xff]
    %v2271 = vld [vmem:[%s2 + $0x1c8] sm:$0xff]
    %v2272 = vld [vmem:[%s2 + $0x1d0] sm:$0xff]
    %v2273 = vld [vmem:[%s2 + $0x1d8] sm:$0xff]
    %v2274 = vld [vmem:[%s2 + $0x1e0] sm:$0xff]
    %v2275 = vld [vmem:[%s2 + $0x1e8] sm:$0xff]
    %v2276 = vld [vmem:[%s2 + $0x1f0] sm:$0xff]
    %v2277 = vld [vmem:[%s2 + $0x1f8] sm:$0xff]
    %v2279 = vperm.slane %v42, 0
    %v2280 = vperm.slane %v42, 4
    %v2283 = vperm.slane %v2279, 0
    %v2284 = vperm.slane %v2280, 0
    %v2349 = vunpack.c.l.b16 %v2214
    %v2350 = vunpack.c.h.b16 %v2214
    %v2351 = vunpack.c.l.b16 %v2215
    %v2352 = vunpack.c.h.b16 %v2215
    %v2353 = vunpack.c.l.b16 %v2216
    %v2354 = vunpack.c.h.b16 %v2216
    %v2355 = vunpack.c.l.b16 %v2217
    %v2356 = vunpack.c.h.b16 %v2217
    %v2357 = vunpack.c.l.b16 %v2218
    %v2358 = vunpack.c.h.b16 %v2218
    %v2359 = vunpack.c.l.b16 %v2219
    %v2360 = vunpack.c.h.b16 %v2219
    %v2361 = vunpack.c.l.b16 %v2220
    %v2362 = vunpack.c.h.b16 %v2220
    %v2363 = vunpack.c.l.b16 %v2221
    %v2364 = vunpack.c.h.b16 %v2221
    %v2365 = vunpack.c.l.b16 %v2222
    %v2366 = vunpack.c.h.b16 %v2222
    %v2367 = vunpack.c.l.b16 %v2223
    %v2368 = vunpack.c.h.b16 %v2223
    %v2369 = vunpack.c.l.b16 %v2224
    %v2370 = vunpack.c.h.b16 %v2224
    %v2371 = vunpack.c.l.b16 %v2225
    %v2372 = vunpack.c.h.b16 %v2225
    %v2373 = vunpack.c.l.b16 %v2226
    %v2374 = vunpack.c.h.b16 %v2226
    %v2375 = vunpack.c.l.b16 %v2227
    %v2376 = vunpack.c.h.b16 %v2227
    %v2377 = vunpack.c.l.b16 %v2228
    %v2378 = vunpack.c.h.b16 %v2228
    %v2379 = vunpack.c.l.b16 %v2229
    %v2380 = vunpack.c.h.b16 %v2229
    %v2381 = vunpack.c.l.b16 %v2230
    %v2382 = vunpack.c.h.b16 %v2230
    %v2383 = vunpack.c.l.b16 %v2231
    %v2384 = vunpack.c.h.b16 %v2231
    %v2385 = vunpack.c.l.b16 %v2232
    %v2386 = vunpack.c.h.b16 %v2232
    %v2387 = vunpack.c.l.b16 %v2233
    %v2388 = vunpack.c.h.b16 %v2233
    %v2389 = vunpack.c.l.b16 %v2234
    %v2390 = vunpack.c.h.b16 %v2234
    %v2391 = vunpack.c.l.b16 %v2235
    %v2392 = vunpack.c.h.b16 %v2235
    %v2393 = vunpack.c.l.b16 %v2236
    %v2394 = vunpack.c.h.b16 %v2236
    %v2395 = vunpack.c.l.b16 %v2237
    %v2396 = vunpack.c.h.b16 %v2237
    %v2397 = vunpack.c.l.b16 %v2238
    %v2398 = vunpack.c.h.b16 %v2238
    %v2399 = vunpack.c.l.b16 %v2239
    %v2400 = vunpack.c.h.b16 %v2239
    %v2401 = vunpack.c.l.b16 %v2240
    %v2402 = vunpack.c.h.b16 %v2240
    %v2403 = vunpack.c.l.b16 %v2241
    %v2404 = vunpack.c.h.b16 %v2241
    %v2405 = vunpack.c.l.b16 %v2242
    %v2406 = vunpack.c.h.b16 %v2242
    %v2407 = vunpack.c.l.b16 %v2243
    %v2408 = vunpack.c.h.b16 %v2243
    %v2409 = vunpack.c.l.b16 %v2244
    %v2410 = vunpack.c.h.b16 %v2244
    %v2411 = vunpack.c.l.b16 %v2245
    %v2412 = vunpack.c.h.b16 %v2245
    %v2413 = vunpack.c.l.b16 %v2246
    %v2414 = vunpack.c.h.b16 %v2246
    %v2415 = vunpack.c.l.b16 %v2247
    %v2416 = vunpack.c.h.b16 %v2247
    %v2417 = vunpack.c.l.b16 %v2248
    %v2418 = vunpack.c.h.b16 %v2248
    %v2419 = vunpack.c.l.b16 %v2249
    %v2420 = vunpack.c.h.b16 %v2249
    %v2421 = vunpack.c.l.b16 %v2250
    %v2422 = vunpack.c.h.b16 %v2250
    %v2423 = vunpack.c.l.b16 %v2251
    %v2424 = vunpack.c.h.b16 %v2251
    %v2425 = vunpack.c.l.b16 %v2252
    %v2426 = vunpack.c.h.b16 %v2252
    %v2427 = vunpack.c.l.b16 %v2253
    %v2428 = vunpack.c.h.b16 %v2253
    %v2429 = vunpack.c.l.b16 %v2254
    %v2430 = vunpack.c.h.b16 %v2254
    %v2431 = vunpack.c.l.b16 %v2255
    %v2432 = vunpack.c.h.b16 %v2255
    %v2433 = vunpack.c.l.b16 %v2256
    %v2434 = vunpack.c.h.b16 %v2256
    %v2435 = vunpack.c.l.b16 %v2257
    %v2436 = vunpack.c.h.b16 %v2257
    %v2437 = vunpack.c.l.b16 %v2258
    %v2438 = vunpack.c.h.b16 %v2258
    %v2439 = vunpack.c.l.b16 %v2259
    %v2440 = vunpack.c.h.b16 %v2259
    %v2441 = vunpack.c.l.b16 %v2260
    %v2442 = vunpack.c.h.b16 %v2260
    %v2443 = vunpack.c.l.b16 %v2261
    %v2444 = vunpack.c.h.b16 %v2261
    %v2445 = vunpack.c.l.b16 %v2262
    %v2446 = vunpack.c.h.b16 %v2262
    %v2447 = vunpack.c.l.b16 %v2263
    %v2448 = vunpack.c.h.b16 %v2263
    %v2449 = vunpack.c.l.b16 %v2264
    %v2450 = vunpack.c.h.b16 %v2264
    %v2451 = vunpack.c.l.b16 %v2265
    %v2452 = vunpack.c.h.b16 %v2265
    %v2453 = vunpack.c.l.b16 %v2266
    %v2454 = vunpack.c.h.b16 %v2266
    %v2455 = vunpack.c.l.b16 %v2267
    %v2456 = vunpack.c.h.b16 %v2267
    %v2457 = vunpack.c.l.b16 %v2268
    %v2458 = vunpack.c.h.b16 %v2268
    %v2459 = vunpack.c.l.b16 %v2269
    %v2460 = vunpack.c.h.b16 %v2269
    %v2461 = vunpack.c.l.b16 %v2270
    %v2462 = vunpack.c.h.b16 %v2270
    %v2463 = vunpack.c.l.b16 %v2271
    %v2464 = vunpack.c.h.b16 %v2271
    %v2465 = vunpack.c.l.b16 %v2272
    %v2466 = vunpack.c.h.b16 %v2272
    %v2467 = vunpack.c.l.b16 %v2273
    %v2468 = vunpack.c.h.b16 %v2273
    %v2469 = vunpack.c.l.b16 %v2274
    %v2470 = vunpack.c.h.b16 %v2274
    %v2471 = vunpack.c.l.b16 %v2275
    %v2472 = vunpack.c.h.b16 %v2275
    %v2473 = vunpack.c.l.b16 %v2276
    %v2474 = vunpack.c.h.b16 %v2276
    %v2475 = vunpack.c.l.b16 %v2277
    %v2476 = vunpack.c.h.b16 %v2277
    %v2477 = vpack.c.b16 %v2351, %v2349
    %v2478 = vpack.c.b16 %v2352, %v2350
    %v2479 = vpack.c.b16 %v2355, %v2353
    %v2480 = vpack.c.b16 %v2356, %v2354
    %v2481 = vpack.c.b16 %v2359, %v2357
    %v2482 = vpack.c.b16 %v2360, %v2358
    %v2483 = vpack.c.b16 %v2363, %v2361
    %v2484 = vpack.c.b16 %v2364, %v2362
    %v2485 = vpack.c.b16 %v2367, %v2365
    %v2486 = vpack.c.b16 %v2368, %v2366
    %v2487 = vpack.c.b16 %v2371, %v2369
    %v2488 = vpack.c.b16 %v2372, %v2370
    %v2489 = vpack.c.b16 %v2375, %v2373
    %v2490 = vpack.c.b16 %v2376, %v2374
    %v2491 = vpack.c.b16 %v2379, %v2377
    %v2492 = vpack.c.b16 %v2380, %v2378
    %v2493 = vpack.c.b16 %v2383, %v2381
    %v2494 = vpack.c.b16 %v2384, %v2382
    %v2495 = vpack.c.b16 %v2387, %v2385
    %v2496 = vpack.c.b16 %v2388, %v2386
    %v2497 = vpack.c.b16 %v2391, %v2389
    %v2498 = vpack.c.b16 %v2392, %v2390
    %v2499 = vpack.c.b16 %v2395, %v2393
    %v2500 = vpack.c.b16 %v2396, %v2394
    %v2501 = vpack.c.b16 %v2399, %v2397
    %v2502 = vpack.c.b16 %v2400, %v2398
    %v2503 = vpack.c.b16 %v2403, %v2401
    %v2504 = vpack.c.b16 %v2404, %v2402
    %v2505 = vpack.c.b16 %v2407, %v2405
    %v2506 = vpack.c.b16 %v2408, %v2406
    %v2507 = vpack.c.b16 %v2411, %v2409
    %v2508 = vpack.c.b16 %v2412, %v2410
    %v2509 = vpack.c.b16 %v2415, %v2413
    %v2510 = vpack.c.b16 %v2416, %v2414
    %v2511 = vpack.c.b16 %v2419, %v2417
    %v2512 = vpack.c.b16 %v2420, %v2418
    %v2513 = vpack.c.b16 %v2423, %v2421
    %v2514 = vpack.c.b16 %v2424, %v2422
    %v2515 = vpack.c.b16 %v2427, %v2425
    %v2516 = vpack.c.b16 %v2428, %v2426
    %v2517 = vpack.c.b16 %v2431, %v2429
    %v2518 = vpack.c.b16 %v2432, %v2430
    %v2519 = vpack.c.b16 %v2435, %v2433
    %v2520 = vpack.c.b16 %v2436, %v2434
    %v2521 = vpack.c.b16 %v2439, %v2437
    %v2522 = vpack.c.b16 %v2440, %v2438
    %v2523 = vpack.c.b16 %v2443, %v2441
    %v2524 = vpack.c.b16 %v2444, %v2442
    %v2525 = vpack.c.b16 %v2447, %v2445
    %v2526 = vpack.c.b16 %v2448, %v2446
    %v2527 = vpack.c.b16 %v2451, %v2449
    %v2528 = vpack.c.b16 %v2452, %v2450
    %v2529 = vpack.c.b16 %v2455, %v2453
    %v2530 = vpack.c.b16 %v2456, %v2454
    %v2531 = vpack.c.b16 %v2459, %v2457
    %v2532 = vpack.c.b16 %v2460, %v2458
    %v2533 = vpack.c.b16 %v2463, %v2461
    %v2534 = vpack.c.b16 %v2464, %v2462
    %v2535 = vpack.c.b16 %v2467, %v2465
    %v2536 = vpack.c.b16 %v2468, %v2466
    %v2537 = vpack.c.b16 %v2471, %v2469
    %v2538 = vpack.c.b16 %v2472, %v2470
    %v2539 = vpack.c.b16 %v2475, %v2473
    %v2540 = vpack.c.b16 %v2476, %v2474
    %2605 = vmatpush.bf16.msra.mxu0 %v2491
    %2606 = vmatpush.bf16.msra.mxu0 %v2489
    %2607 = vmatpush.bf16.msra.mxu0 %v2487
    %2608 = vmatpush.bf16.msra.mxu0 %v2485
    %2609 = vmatpush.bf16.msra.mxu0 %v2483
    %2610 = vmatpush.bf16.msra.mxu0 %v2481
    %2611 = vmatpush.bf16.msra.mxu0 %v2479
    %2612 = vmatpush.bf16.msra.mxu0 %v2477
    %2613 = vmatmul.bf16.gmra.mxu0 %v2210
    %v2614 = vpop.f32.mrf.mxu0
    %v2615 = vadd.f32 %v2283, %v2614
    %v2616 = vpop.f32.mrf.mxu0
    %2617 = vdwg.mxu0
    %2618 = vmatpush.bf16.msra.mxu0 %v2507
    %2619 = vmatpush.bf16.msra.mxu0 %v2505
    %2620 = vmatpush.bf16.msra.mxu0 %v2503
    %2621 = vmatpush.bf16.msra.mxu0 %v2501
    %2622 = vmatpush.bf16.msra.mxu0 %v2499
    %2623 = vmatpush.bf16.msra.mxu0 %v2497
    %2624 = vmatpush.bf16.msra.mxu0 %v2495
    %2625 = vmatpush.bf16.msra.mxu0 %v2493
    %2626 = vmatmul.bf16.gmra.mxu0 %v2211
    %v2627 = vpop.f32.mrf.mxu0
    %v2628 = vadd.f32 %v2615, %v2627
    %v2629 = vpop.f32.mrf.mxu0
    %2630 = vdwg.mxu0
    %2631 = vmatpush.bf16.msra.mxu0 %v2523
    %2632 = vmatpush.bf16.msra.mxu0 %v2521
    %2633 = vmatpush.bf16.msra.mxu0 %v2519
    %2634 = vmatpush.bf16.msra.mxu0 %v2517
    %2635 = vmatpush.bf16.msra.mxu0 %v2515
    %2636 = vmatpush.bf16.msra.mxu0 %v2513
    %2637 = vmatpush.bf16.msra.mxu0 %v2511
    %2638 = vmatpush.bf16.msra.mxu0 %v2509
    %2639 = vmatmul.bf16.gmra.mxu0 %v2212
    %v2640 = vpop.f32.mrf.mxu0
    %v2641 = vadd.f32 %v2628, %v2640
    %v2642 = vpop.f32.mrf.mxu0
    %2643 = vdwg.mxu0
    %2644 = vmatpush.bf16.msra.mxu0 %v2539
    %2645 = vmatpush.bf16.msra.mxu0 %v2537
    %2646 = vmatpush.bf16.msra.mxu0 %v2535
    %2647 = vmatpush.bf16.msra.mxu0 %v2533
    %2648 = vmatpush.bf16.msra.mxu0 %v2531
    %2649 = vmatpush.bf16.msra.mxu0 %v2529
    %2650 = vmatpush.bf16.msra.mxu0 %v2527
    %2651 = vmatpush.bf16.msra.mxu0 %v2525
    %2652 = vmatmul.bf16.gmra.mxu0 %v2213
    %v2653 = vpop.f32.mrf.mxu0
    %v2654 = vadd.f32 %v2641, %v2653
    %v2655 = vpop.f32.mrf.mxu0
    %2656 = vdwg.mxu0
    %2657 = vmatpush.bf16.msra.mxu0 %v2492
    %2658 = vmatpush.bf16.msra.mxu0 %v2490
    %2659 = vmatpush.bf16.msra.mxu0 %v2488
    %2660 = vmatpush.bf16.msra.mxu0 %v2486
    %2661 = vmatpush.bf16.msra.mxu0 %v2484
    %2662 = vmatpush.bf16.msra.mxu0 %v2482
    %2663 = vmatpush.bf16.msra.mxu0 %v2480
    %2664 = vmatpush.bf16.msra.mxu0 %v2478
    %2665 = vmatmul.bf16.gmra.mxu0 %v2210
    %v2666 = vpop.f32.mrf.mxu0
    %v2667 = vadd.f32 %v2284, %v2666
    %v2668 = vpop.f32.mrf.mxu0
    %2669 = vdwg.mxu0
    %2670 = vmatpush.bf16.msra.mxu0 %v2508
    %2671 = vmatpush.bf16.msra.mxu0 %v2506
    %2672 = vmatpush.bf16.msra.mxu0 %v2504
    %2673 = vmatpush.bf16.msra.mxu0 %v2502
    %2674 = vmatpush.bf16.msra.mxu0 %v2500
    %2675 = vmatpush.bf16.msra.mxu0 %v2498
    %2676 = vmatpush.bf16.msra.mxu0 %v2496
    %2677 = vmatpush.bf16.msra.mxu0 %v2494
    %2678 = vmatmul.bf16.gmra.mxu0 %v2211
    %v2679 = vpop.f32.mrf.mxu0
    %v2680 = vadd.f32 %v2667, %v2679
    %v2681 = vpop.f32.mrf.mxu0
    %2682 = vdwg.mxu0
    %2683 = vmatpush.bf16.msra.mxu0 %v2524
    %2684 = vmatpush.bf16.msra.mxu0 %v2522
    %2685 = vmatpush.bf16.msra.mxu0 %v2520
    %2686 = vmatpush.bf16.msra.mxu0 %v2518
    %2687 = vmatpush.bf16.msra.mxu0 %v2516
    %2688 = vmatpush.bf16.msra.mxu0 %v2514
    %2689 = vmatpush.bf16.msra.mxu0 %v2512
    %2690 = vmatpush.bf16.msra.mxu0 %v2510
    %2691 = vmatmul.bf16.gmra.mxu0 %v2212
    %v2692 = vpop.f32.mrf.mxu0
    %v2693 = vadd.f32 %v2680, %v2692
    %v2694 = vpop.f32.mrf.mxu0
    %2695 = vdwg.mxu0
    %2696 = vmatpush.bf16.msra.mxu0 %v2540
    %2697 = vmatpush.bf16.msra.mxu0 %v2538
    %2698 = vmatpush.bf16.msra.mxu0 %v2536
    %2699 = vmatpush.bf16.msra.mxu0 %v2534
    %2700 = vmatpush.bf16.msra.mxu0 %v2532
    %2701 = vmatpush.bf16.msra.mxu0 %v2530
    %2702 = vmatpush.bf16.msra.mxu0 %v2528
    %2703 = vmatpush.bf16.msra.mxu0 %v2526
    %2704 = vmatmul.bf16.gmra.mxu0 %v2213
    %v2705 = vpop.f32.mrf.mxu0
    %v2706 = vadd.f32 %v2693, %v2705
    %v2707 = vpop.f32.mrf.mxu0
    %2708 = vdwg.mxu0
    %v2709 = vmax.f32 %v2654, 0.0
    %v2710 = vmax.f32 %v2706, 0.0
    %v2711 = vrot.slane %v2709, 4
    %v2712 = vadd.f32 %v2709, %v2711
    %v2713 = vrot.slane %v2712, 2
    %v2714 = vadd.f32 %v2712, %v2713
    %v2715 = vrot.slane %v2714, 1
    %v2716 = vadd.f32 %v2714, %v2715
    %v2717 = vrot.slane %v2710, 4
    %v2718 = vadd.f32 %v2710, %v2717
    %v2719 = vrot.slane %v2718, 2
    %v2720 = vadd.f32 %v2718, %v2719
    %v2721 = vrot.slane %v2720, 1
    %v2722 = vadd.f32 %v2720, %v2721
    %v2723 = vmul.f32 %v2716, %v2076
    %v2724 = vmul.f32 %v2722, %v2076
    %v2725 = vsub.f32 %v2709, %v2723
    %v2726 = vsub.f32 %v2710, %v2724
    %v2727 = vmul.f32 %v2725, %v2725
    %v2728 = vmul.f32 %v2726, %v2726
    %v2729 = vrot.slane %v2727, 4
    %v2730 = vadd.f32 %v2727, %v2729
    %v2731 = vrot.slane %v2730, 2
    %v2732 = vadd.f32 %v2730, %v2731
    %v2733 = vrot.slane %v2732, 1
    %v2734 = vadd.f32 %v2732, %v2733
    %v2735 = vrot.slane %v2728, 4
    %v2736 = vadd.f32 %v2728, %v2735
    %v2737 = vrot.slane %v2736, 2
    %v2738 = vadd.f32 %v2736, %v2737
    %v2739 = vrot.slane %v2738, 1
    %v2740 = vadd.f32 %v2738, %v2739
    %v2741 = vmul.f32 %v2734, %v2076
    %v2742 = vmul.f32 %v2740, %v2076
    %v2743 = vadd.f32 %v2741, 1e-05
    %v2744 = vadd.f32 %v2742, 1e-05
    %v2745 = vrsqrt.pop %v2743
    %v2746 = vmul.f32 %v2745, %v2743
    %v2747 = vmul.f32 %v2746, %v2745
    %v2748 = vmul.f32 0.5, %v2747
    %v2749 = vsub.f32 1.5, %v2748
    %v2750 = vmul.f32 %v2745, %v2749
    %vm2751 = vweird.f32 %v2743
    %vm2752 = vweird.f32 %v2745
    %vm2753 = vmor %vm2751, %vm2752
    %v2754 = vsel %vm2753, %v2745, %v2750
    %v2755 = vrsqrt.pop %v2744
    %v2756 = vmul.f32 %v2755, %v2744
    %v2757 = vmul.f32 %v2756, %v2755
    %v2758 = vmul.f32 0.5, %v2757
    %v2759 = vsub.f32 1.5, %v2758
    %v2760 = vmul.f32 %v2755, %v2759
    %vm2761 = vweird.f32 %v2744
    %vm2762 = vweird.f32 %v2755
    %vm2763 = vmor %vm2761, %vm2762
    %v2764 = vsel %vm2763, %v2755, %v2760
    %v2767 = vrot.slane %v2764, 4
    %v2768 = vsel %vm2167, %v2754, %v2767
    %v2769 = vrot.slane %v2768, 7
    %v2771 = vmul.f32 %v42, %v2769
    %v2773 = vperm.slane %v2771, 1
    %v2774 = vperm.slane %v2771, 5
    %v2777 = vperm.slane %v2773, 1
    %v2778 = vperm.slane %v2774, 1
    %v2779 = vmul.f32 %v2725, %v2777
    %v2780 = vmul.f32 %v2726, %v2778
    %v2781 = vperm.slane %v42, 2
    %v2782 = vperm.slane %v42, 6
    %v2785 = vperm.slane %v2781, 2
    %v2786 = vperm.slane %v2782, 2
    %v2787 = vadd.f32 %v2779, %v2785
    %v2788 = vadd.f32 %v2780, %v2786
    %2789 = vst [vmem:[#allocation6] sm:$0xff] %v2787
    %2790 = vst [vmem:[#allocation6 + $0x8] sm:$0xff] %v2788
    %v2791 = vpack.c.bf16 %v2787, %v2787
    %v2792 = vpack.c.bf16 %v2788, %v2788
    %v2793 = vld [vmem:[%s3] sm:$0xf]
    %v2794 = vld [vmem:[%s3 + $0x4] sm:$0xf]
    %v2795 = vld [vmem:[%s3 + $0x8] sm:$0xf]
    %v2796 = vld [vmem:[%s3 + $0xc] sm:$0xf]
    %v2797 = vld [vmem:[%s3 + $0x10] sm:$0xf]
    %v2798 = vld [vmem:[%s3 + $0x14] sm:$0xf]
    %v2799 = vld [vmem:[%s3 + $0x18] sm:$0xf]
    %v2800 = vld [vmem:[%s3 + $0x1c] sm:$0xf]
    %v2801 = vld [vmem:[%s3 + $0x20] sm:$0xf]
    %v2802 = vld [vmem:[%s3 + $0x24] sm:$0xf]
    %v2803 = vld [vmem:[%s3 + $0x28] sm:$0xf]
    %v2804 = vld [vmem:[%s3 + $0x2c] sm:$0xf]
    %v2805 = vld [vmem:[%s3 + $0x30] sm:$0xf]
    %v2806 = vld [vmem:[%s3 + $0x34] sm:$0xf]
    %v2807 = vld [vmem:[%s3 + $0x38] sm:$0xf]
    %v2808 = vld [vmem:[%s3 + $0x3c] sm:$0xf]
    %v2809 = vld [vmem:[%s3 + $0x40] sm:$0xf]
    %v2810 = vld [vmem:[%s3 + $0x44] sm:$0xf]
    %v2811 = vld [vmem:[%s3 + $0x48] sm:$0xf]
    %v2812 = vld [vmem:[%s3 + $0x4c] sm:$0xf]
    %v2813 = vld [vmem:[%s3 + $0x50] sm:$0xf]
    %v2814 = vld [vmem:[%s3 + $0x54] sm:$0xf]
    %v2815 = vld [vmem:[%s3 + $0x58] sm:$0xf]
    %v2816 = vld [vmem:[%s3 + $0x5c] sm:$0xf]
    %v2817 = vld [vmem:[%s3 + $0x60] sm:$0xf]
    %v2818 = vld [vmem:[%s3 + $0x64] sm:$0xf]
    %v2819 = vld [vmem:[%s3 + $0x68] sm:$0xf]
    %v2820 = vld [vmem:[%s3 + $0x6c] sm:$0xf]
    %v2821 = vld [vmem:[%s3 + $0x70] sm:$0xf]
    %v2822 = vld [vmem:[%s3 + $0x74] sm:$0xf]
    %v2823 = vld [vmem:[%s3 + $0x78] sm:$0xf]
    %v2824 = vld [vmem:[%s3 + $0x7c] sm:$0xf]
    %v2825 = vperm.slane %v43, 0
    %v2858 = vunpack.c.l.b16 %v2793
    %v2859 = vunpack.c.l.b16 %v2794
    %v2860 = vunpack.c.l.b16 %v2795
    %v2861 = vunpack.c.l.b16 %v2796
    %v2862 = vunpack.c.l.b16 %v2797
    %v2863 = vunpack.c.l.b16 %v2798
    %v2864 = vunpack.c.l.b16 %v2799
    %v2865 = vunpack.c.l.b16 %v2800
    %v2866 = vunpack.c.l.b16 %v2801
    %v2867 = vunpack.c.l.b16 %v2802
    %v2868 = vunpack.c.l.b16 %v2803
    %v2869 = vunpack.c.l.b16 %v2804
    %v2870 = vunpack.c.l.b16 %v2805
    %v2871 = vunpack.c.l.b16 %v2806
    %v2872 = vunpack.c.l.b16 %v2807
    %v2873 = vunpack.c.l.b16 %v2808
    %v2874 = vunpack.c.l.b16 %v2809
    %v2875 = vunpack.c.l.b16 %v2810
    %v2876 = vunpack.c.l.b16 %v2811
    %v2877 = vunpack.c.l.b16 %v2812
    %v2878 = vunpack.c.l.b16 %v2813
    %v2879 = vunpack.c.l.b16 %v2814
    %v2880 = vunpack.c.l.b16 %v2815
    %v2881 = vunpack.c.l.b16 %v2816
    %v2882 = vunpack.c.l.b16 %v2817
    %v2883 = vunpack.c.l.b16 %v2818
    %v2884 = vunpack.c.l.b16 %v2819
    %v2885 = vunpack.c.l.b16 %v2820
    %v2886 = vunpack.c.l.b16 %v2821
    %v2887 = vunpack.c.l.b16 %v2822
    %v2888 = vunpack.c.l.b16 %v2823
    %v2889 = vunpack.c.l.b16 %v2824
    %v2890 = vpack.c.b16 %v2859, %v2858
    %v2891 = vpack.c.b16 %v2861, %v2860
    %v2892 = vpack.c.b16 %v2863, %v2862
    %v2893 = vpack.c.b16 %v2865, %v2864
    %v2894 = vpack.c.b16 %v2867, %v2866
    %v2895 = vpack.c.b16 %v2869, %v2868
    %v2896 = vpack.c.b16 %v2871, %v2870
    %v2897 = vpack.c.b16 %v2873, %v2872
    %v2898 = vpack.c.b16 %v2875, %v2874
    %v2899 = vpack.c.b16 %v2877, %v2876
    %v2900 = vpack.c.b16 %v2879, %v2878
    %v2901 = vpack.c.b16 %v2881, %v2880
    %v2902 = vpack.c.b16 %v2883, %v2882
    %v2903 = vpack.c.b16 %v2885, %v2884
    %v2904 = vpack.c.b16 %v2887, %v2886
    %v2905 = vpack.c.b16 %v2889, %v2888
    %2922 = vmatpush.bf16.msra.mxu0 %v2897
    %2923 = vmatpush.bf16.msra.mxu0 %v2896
    %2924 = vmatpush.bf16.msra.mxu0 %v2895
    %2925 = vmatpush.bf16.msra.mxu0 %v2894
    %2926 = vmatpush.bf16.msra.mxu0 %v2893
    %2927 = vmatpush.bf16.msra.mxu0 %v2892
    %2928 = vmatpush.bf16.msra.mxu0 %v2891
    %2929 = vmatpush.bf16.msra.mxu0 %v2890
    %2930 = vmatmul.bf16.gmra.mxu0 %v2791
    %v2931 = vpop.f32.mrf.mxu0
    %v2932 = vadd.f32 %v2825, %v2931
    %v2933 = vpop.f32.mrf.mxu0
    %2934 = vdwg.mxu0
    %2935 = vmatpush.bf16.msra.mxu0 %v2905
    %2936 = vmatpush.bf16.msra.mxu0 %v2904
    %2937 = vmatpush.bf16.msra.mxu0 %v2903
    %2938 = vmatpush.bf16.msra.mxu0 %v2902
    %2939 = vmatpush.bf16.msra.mxu0 %v2901
    %2940 = vmatpush.bf16.msra.mxu0 %v2900
    %2941 = vmatpush.bf16.msra.mxu0 %v2899
    %2942 = vmatpush.bf16.msra.mxu0 %v2898
    %2943 = vmatmul.bf16.gmra.mxu0 %v2792
    %v2944 = vpop.f32.mrf.mxu0
    %v2945 = vadd.f32 %v2932, %v2944
    %v2946 = vpop.f32.mrf.mxu0
    %2947 = vdwg.mxu0
    %2948 = vst [vmem:[#allocation5] sm:$0xff] 0.0
    %vm2949 = vcmask 130048
    %2950 = vst.msk [vmem:[#allocation5] sm:$0xff] %vm2949, %v2945
    // Predicated region
    $region26: #{mlp_forward.1} parent=1 // pred_check
      _
    $region27: #{mlp_forward.1} parent=1 // pred_check_branch
      %2952 = sbr.rel (0) target = $region29
    $region28: #{mlp_forward.1} parent=1 // pred_region
      %2954 = vsyncadd [#allocation4], 0
      %s2956 = sshll.u32 [#allocation5], 4
      %s2957 = int_to_ptr.vmem [resolvable:$true] %s2956
      %s2958 = sshll.u32 %s5, 4
      %s2959 = int_to_ptr.hbm [resolvable:$true] %s2958
      %2961 = dma.vmem_to_hbm [thread:$0]  %s2957, 128, %s2959, [#allocation4]
    $region29: #{mlp_forward.1} parent=1 // pred_fallthru
      _
    // Predicated region
    $region30: #{mlp_forward.1} parent=1 // pred_check
      _
    $region31: #{mlp_forward.1} parent=1 // pred_check_branch
      %2963 = sbr.rel (0) target = $region33
    $region32: #{mlp_forward.1} parent=1 // pred_region
      %2965 = vsyncadd [#allocation7], 0
      %s2967 = sshll.u32 [#allocation6], 4
      %s2968 = int_to_ptr.vmem [resolvable:$true] %s2967
      %s2969 = sshll.u32 %s6, 4
      %s2970 = int_to_ptr.hbm [resolvable:$true] %s2969
      %2972 = dma.vmem_to_hbm [thread:$0]  %s2968, 256, %s2970, [#allocation7]
    $region33: #{mlp_forward.1} parent=1 // pred_fallthru
      _
    // Predicated region
    $region34: #{mlp_forward.1} parent=1 // pred_check
      _
    $region35: #{mlp_forward.1} parent=1 // pred_check_branch
      %2974 = sbr.rel (0) target = $region37
    $region36: #{mlp_forward.1} parent=1 // pred_region
      %2976 = dma.done [#allocation4], 128
    $region37: #{mlp_forward.1} parent=1 // pred_fallthru
      _
    // Predicated region
    $region38: #{mlp_forward.1} parent=1 // pred_check
      _
    $region39: #{mlp_forward.1} parent=1 // pred_check_branch
      %2978 = sbr.rel (0) target = $region41
    $region40: #{mlp_forward.1} parent=1 // pred_region
      %2980 = dma.done [#allocation7], 256
    $region41: #{mlp_forward.1} parent=1 // pred_fallthru
      _
    %2981 = vsyncpa [#allocation3], 1
    %2982 = vsyncpa [#allocation4], 1
    %2983 = vsyncpa [#allocation7], 1

</llo_original>
